<compile_context>
chip_gen: v5e
topology: v5e:2x2
jax: 0.10.0
libtpu: 0.0.40
codegen_flags: <defaults>
</compile_context>

<pallas_src>
import functools

import numpy as np
import jax
import jax.numpy as jnp
from jax.experimental import pallas as pl
from jax.experimental.pallas import tpu as pltpu

NEG_SLOPE = 0.01   # nn.LeakyReLU default / nnU-Net nonlin_kwargs negative_slope=1e-2
EPS = 1e-5         # nn.InstanceNorm2d default eps


def _round_up(x, m):
    return ((x + m - 1) // m) * m


def _lane_roll(x, s):
    """out[:, p] = x[:, (p + s) % L] for a static shift s in [0, L)."""
    if s == 0:
        return x
    return jnp.concatenate([x[:, s:], x[:, :s]], axis=1)


def _instnorm_lrelu(acc, pvec):
    """conv bias + InstanceNorm2d(affine) + LeakyReLU(0.01) on channels-first (C, H*W).

    pvec: (C, 4) f32 columns = [bias, gamma, beta, unused].
    Lane dim is H*W -> the statistics reduction is a cross-lane (XLU) reduction and the
    elementwise math runs on fully occupied vregs.  Two-pass variance (numerics).
    """
    bias = pvec[:, 0:1]
    gamma = pvec[:, 1:2]
    beta = pvec[:, 2:3]
    x = acc + bias
    mean = jnp.mean(x, axis=1, keepdims=True)
    cent = x - mean
    var = jnp.mean(cent * cent, axis=1, keepdims=True)     # biased, like InstanceNorm2d
    y = cent * jax.lax.rsqrt(var + EPS) * gamma + beta
    return jnp.where(y > 0, y, NEG_SLOPE * y)               # LeakyReLU(0.01)


def _im2col(src, taps, mask_ref):
    """Stage all KH*KW shifted windows of a channels-first (Cp, H*W) feature map.

    Boundary handling is lane-roll + 0/1 mask in flattened (H*W) space (no padded
    spatial buffer).  Cp is a multiple of 8, so the sublane concat of the tap pieces
    is tile-aligned.  Returns (KH*KW*Cp, H*W) in src.dtype (tap-major, channel-minor).
    """
    pieces = []
    for t, (shift, needs_mask) in enumerate(taps):
        piece = _lane_roll(src, shift)
        if needs_mask:
            piece = piece * mask_ref[pl.ds(t, 1), :]
        pieces.append(piece)
    if len(pieces) == 1:
        return pieces[0]
    return jnp.concatenate(pieces, axis=0)


def _dense_layer_kernel(x_ref, w_ref, p_ref, mask_ref, o_ref, feat_ref, *,
                        HW, taps, cin0, g0, gpad, num_blocks,
                        c_one_pad, cout, c_total_pad, mdt):
    """Fused DenseLayer forward for ONE batch sample (channels-first, lane dim = H*W)."""
    n_taps = len(taps)

    # x arrives lane-dense as (cin0, H*W); pad to the 8-aligned slab width and store.
    x = x_ref[0].astype(jnp.float32)
    if g0 > cin0:
        x = jnp.concatenate([x, jnp.zeros((g0 - cin0, HW), jnp.float32)], axis=0)
    feat_ref[pl.ds(0, g0), :] = x

    # BasicDenseBlocks (Conv(k) -> Dropout(p=0)=Identity -> InstanceNorm -> LeakyReLU)
    # + dense channel concat.  Each conv is ONE im2col matmul with K = KH*KW*cin_pad.
    for i in range(num_blocks):
        cin_p = g0 + i * gpad
        src = feat_ref[pl.ds(0, cin_p), :].astype(mdt)
        patches = _im2col(src, taps, mask_ref)                 # (n_taps*cin_p, HW) mdt
        w_i = w_ref[i][:, :n_taps * cin_p]                     # (CP, n_taps*cin_p) mdt
        acc = jnp.dot(w_i, patches, preferred_element_type=jnp.float32)
        y = _instnorm_lrelu(acc, p_ref[i])                     # rows >= growth are exact 0
        feat_ref[pl.ds(cin_p, gpad), :] = y[:gpad]             # aligned, unmasked slab store

    # final_one_conv: 1x1 conv over the whole concat buffer (K = c_total_pad, no taps).
    w_one = w_ref[num_blocks][:, :c_total_pad]
    acc = jnp.dot(w_one, feat_ref[...].astype(mdt),
                  preferred_element_type=jnp.float32)
    y_one = _instnorm_lrelu(acc, p_ref[num_blocks])            # rows >= cout are exact 0

    # final_pooling_conv (default first_stride=None -> stride 1).
    patches = _im2col(y_one[:c_one_pad].astype(mdt), taps, mask_ref)
    w_pool = w_ref[num_blocks + 1][:, :n_taps * c_one_pad]
    acc = jnp.dot(w_pool, patches, preferred_element_type=jnp.float32)
    y2 = _instnorm_lrelu(acc, p_ref[num_blocks + 1])

    # Lane-dense straight store: (cout, H*W) == this sample's flattened NCHW output.
    o_ref[0] = y2[:cout].astype(o_ref.dtype)


def _pack_conv(w, b, g, be, slab_sizes, CP, K_max):
    """Pack one conv's weight into the in-kernel im2col layout.

    Returns (CP, K_max) weight matrix (tap-major, padded-channel-minor, zero rows/cols
    at all 8-alignment padding positions) and a (CP, 4) [bias, gamma, beta, 0] table.
    """
    w = np.asarray(w, np.float32)
    KHc, KWc, cin, cout_c = w.shape
    cin_p = sum(p for _, p in slab_sizes)
    idx, off = [], 0
    for orig, padded in slab_sizes:
        idx.extend(range(off, off + orig))
        off += padded
    idx = np.asarray(idx)
    assert idx.size == cin, (idx.size, cin)
    wm = np.zeros((CP, K_max), np.float32)
    t = 0
    for ky in range(KHc):
        for kx in range(KWc):
            wm[:cout_c, t * cin_p + idx] = w[ky, kx].T
            t += 1
    pv = np.zeros((CP, 4), np.float32)
    pv[:cout_c, 0] = np.asarray(b, np.float32)
    pv[:cout_c, 1] = np.asarray(g, np.float32)
    pv[:cout_c, 2] = np.asarray(be, np.float32)
    return wm, pv


def dense_layer_forward(x_nchw, params, kernel_size, first_stride=None,
                        matmul_dtype=jnp.bfloat16):
    """Matches DenseLayer.forward.  x_nchw: (N, Cin, H, W) f32 -> (N, Cout, H, W) f32."""
    if first_stride is not None:
        # TODO(synk): strided final_pooling_conv not implemented.
        raise NotImplementedError("first_stride != None is not supported")
    KH, KW = kernel_size
    assert KH % 2 == 1 and KW % 2 == 1, "only odd kernel sizes are supported"
    ph, pw = (KH - 1) // 2, (KW - 1) // 2
    N, cin0, H, W = x_nchw.shape
    HW = H * W

    blocks = params['blocks']
    num_blocks = len(blocks)
    growth = blocks[0][0].shape[-1] if num_blocks else 0
    c_one = params['one'][0].shape[-1]      # final_one_conv out channels
    cout = params['pool'][0].shape[-1]      # final output channels

    # 8-aligned channel slab sizes -> tile-aligned concat stores & im2col stacking.
    g0 = _round_up(cin0, 8)
    gpad = _round_up(growth, 8) if num_blocks else 0
    c_one_pad = _round_up(c_one, 8)
    c_total_pad = g0 + num_blocks * gpad
    CP = max(gpad, c_one_pad, _round_up(cout, 8))
    n_taps = KH * KW

    # Static tap table (lane-roll shift + whether a boundary mask is needed) and the
    # precomputed 0/1 boundary masks (one (H*W,) row per tap).
    taps = []
    masks = np.zeros((n_taps, HW), np.float32)
    hh = np.arange(H).reshape(H, 1)
    ww = np.arange(W).reshape(1, W)
    t = 0
    for dy in range(-ph, ph + 1):
        for dx in range(-pw, pw + 1):
            valid = (hh + dy >= 0) & (hh + dy < H) & (ww + dx >= 0) & (ww + dx < W)
            masks[t] = valid.reshape(-1).astype(np.float32)
            taps.append(((dy * W + dx) % HW, not (dy == 0 and dx == 0)))
            t += 1

    # Per-conv im2col K and the packed weight / param tables (one operand each).
    k_list = ([n_taps * (g0 + i * gpad) for i in range(num_blocks)]
              + [c_total_pad] + [n_taps * c_one_pad])
    K_max = max(k_list)

    w_list, p_list = [], []
    for i in range(num_blocks):
        slabs = [(cin0, g0)] + [(growth, gpad)] * i
        wm, pv = _pack_conv(*blocks[i], slabs, CP, K_max)
        w_list.append(wm)
        p_list.append(pv)
    slabs_all = [(cin0, g0)] + [(growth, gpad)] * num_blocks
    wm, pv = _pack_conv(*params['one'], slabs_all, CP, K_max)
    w_list.append(wm)
    p_list.append(pv)
    wm, pv = _pack_conv(*params['pool'], [(c_one, c_one_pad)], CP, K_max)
    w_list.append(wm)
    p_list.append(pv)

    w_all = jnp.asarray(np.stack(w_list), dtype=matmul_dtype)    # (n_conv, CP, K_max)
    p_all = jnp.asarray(np.stack(p_list), dtype=jnp.float32)     # (n_conv, CP, 4)
    mask_arr = jnp.asarray(masks, dtype=matmul_dtype)            # (n_taps, HW)

    x_flat = x_nchw.reshape(N, cin0, HW).astype(jnp.float32)     # lane-dense NCHW

    kernel = functools.partial(
        _dense_layer_kernel, HW=HW, taps=tuple(taps), cin0=cin0, g0=g0, gpad=gpad,
        num_blocks=num_blocks, c_one_pad=c_one_pad, cout=cout,
        c_total_pad=c_total_pad, mdt=matmul_dtype)

    out = pl.pallas_call(
        kernel,
        out_shape=jax.ShapeDtypeStruct((N, cout, HW), jnp.float32),
        grid_spec=pltpu.PrefetchScalarGridSpec(
            num_scalar_prefetch=0,
            grid=(N,),
            in_specs=[
                pl.BlockSpec((1, cin0, HW), lambda n: (n, 0, 0)),
                # Constant index maps -> weights/params/masks stay VMEM-resident.
                pl.BlockSpec(w_all.shape, lambda n: (0, 0, 0)),
                pl.BlockSpec(p_all.shape, lambda n: (0, 0, 0)),
                pl.BlockSpec(mask_arr.shape, lambda n: (0, 0)),
            ],
            out_specs=pl.BlockSpec((1, cout, HW), lambda n: (n, 0, 0)),
            scratch_shapes=[
                # Channels-first dense-concat buffer: (c_total_pad, H*W) f32.
                pltpu.VMEM((c_total_pad, HW), jnp.float32),
            ],
        ),
        compiler_params=pltpu.CompilerParams(
            dimension_semantics=("parallel",),       # one sample per TensorCore on v7x
            vmem_limit_bytes=32 * 1024 * 1024,       # explicit (safe on v5e/v6e/v7x)
        ),
    )(x_flat, w_all, p_all, mask_arr)
    return out.reshape(N, cout, H, W)


def init_dense_layer_params(key, input_channels, output_channels, kernel_size,
                            num_blocks, growth_rate):
    """Deterministic synthetic parameters matching the module's shapes."""
    KH, KW = kernel_size
    keys = jax.random.split(key, num_blocks + 2)
    params = {'blocks': [], 'one': None, 'pool': None}

    def _conv_params(k, kh, kw_, cin, cout):
        kw1, kb1 = jax.random.split(k)
        fan_in = cin * kh * kw_
        w = jax.random.normal(kw1, (kh, kw_, cin, cout), jnp.float32) / jnp.sqrt(float(fan_in))
        b = 0.01 * jax.random.normal(kb1, (cout,), jnp.float32)
        gamma = jnp.ones((cout,), jnp.float32)    # InstanceNorm affine init
        beta = jnp.zeros((cout,), jnp.float32)
        return (w, b, gamma, beta)

    for i in range(num_blocks):
        cin = input_channels + i * growth_rate
        params['blocks'].append(_conv_params(keys[i], KH, KW, cin, growth_rate))

    cin = input_channels + num_blocks * growth_rate
    params['one'] = _conv_params(keys[num_blocks], 1, 1, cin, output_channels)
    params['pool'] = _conv_params(keys[num_blocks + 1], KH, KW, output_channels, output_channels)
    return params


def _reference_forward(x_nchw, params, kernel_size):
    """Pure-JAX (XLA) reference of DenseLayer.forward for correctness checking."""
    KH, KW = kernel_size
    ph, pw = (KH - 1) // 2, (KW - 1) // 2
    x = jnp.transpose(x_nchw, (0, 2, 3, 1))   # NCHW -> NHWC

    def block(x, w, b, g, be, pad):
        y = jax.lax.conv_general_dilated(
            x, w, window_strides=(1, 1),
            padding=[(pad[0], pad[0]), (pad[1], pad[1])],
            dimension_numbers=('NHWC', 'HWIO', 'NHWC'))
        y = y + b.reshape(1, 1, 1, -1)
        mean = jnp.mean(y, axis=(1, 2), keepdims=True)
        var = jnp.mean((y - mean) ** 2, axis=(1, 2), keepdims=True)
        y = (y - mean) * jax.lax.rsqrt(var + EPS)
        y = y * g.reshape(1, 1, 1, -1) + be.reshape(1, 1, 1, -1)
        return jnp.where(y > 0, y, NEG_SLOPE * y)

    for (w, b, g, be) in params['blocks']:
        out = block(x, w, b, g, be, (ph, pw))
        x = jnp.concatenate([x, out], axis=-1)
    w, b, g, be = params['one']
    x = block(x, w, b, g, be, (0, 0))
    w, b, g, be = params['pool']
    x = block(x, w, b, g, be, (ph, pw))
    return jnp.transpose(x, (0, 3, 1, 2))      # NHWC -> NCHW


if __name__ == "__main__":
    key = jax.random.PRNGKey(0)
    k_x, k_p = jax.random.split(key)

    N, C, H, W = 2, 4, 16, 16
    input_channels, output_channels = C, 8
    kernel_size = (3, 3)
    num_blocks, growth_rate = 2, 10

    x = jax.random.normal(k_x, (N, C, H, W), jnp.float32)
    params = init_dense_layer_params(k_p, input_channels, output_channels,
                                     kernel_size, num_blocks, growth_rate)

    y_ref = jax.block_until_ready(_reference_forward(x, params, kernel_size))

    # f32-operand path: validates the fused kernel structure.
    y32 = dense_layer_forward(x, params, kernel_size, matmul_dtype=jnp.float32)
    y32 = jax.block_until_ready(y32)
    assert y32.shape == (N, output_channels, H, W), y32.shape
    err32 = float(jnp.max(jnp.abs(y32 - y_ref)))
    # Tolerance accounts for TPU default matmul precision in both kernel and reference;
    # a structural bug (wrong roll/mask/weight packing) produces O(1) errors.
    assert err32 < 1e-1, f"f32-path max abs err vs reference: {err32}"

    # Default bf16-staged matmul path (perf recommendation for v6e/v7x MXU).
    y16 = jax.block_until_ready(dense_layer_forward(x, params, kernel_size))
    assert y16.shape == (N, output_channels, H, W), y16.shape
    err16 = float(jnp.max(jnp.abs(y16 - y_ref)))
    assert err16 < 1e-1, f"bf16-path max abs err vs reference: {err16}"

    print("KERNEL_OK")
</pallas_src>

<mosaic_0001>
module attributes {stable_mosaic.version = 11 : i64} {
  func.func @_dense_layer_kernel(%arg0: i32, %arg1: memref<1x4x256xf32, #tpu.memory_space<vmem>>, %arg2: memref<4x16x216xf32, #tpu.memory_space<vmem>>, %arg3: memref<4x16x4xf32, #tpu.memory_space<vmem>>, %arg4: memref<9x256xf32, #tpu.memory_space<vmem>>, %arg5: memref<1x8x256xf32, #tpu.memory_space<vmem>>, %arg6: memref<40x256xf32, #tpu.memory_space<vmem>>) attributes {dimension_semantics = [#tpu.dimension_semantics<parallel>], iteration_bounds = array<i64: 2>, scalar_prefetch = 0 : i64, scratch_operands = 1 : i64, tpu.core_type = #tpu.core_type<tc>, window_params = [{transform_indices = @transform_0, window_bounds = array<i64: 1, 4, 256>}, {pipeline_mode = #tpu.pipeline_mode<synchronous>, transform_indices = @transform_1, window_bounds = array<i64: 4, 16, 216>}, {pipeline_mode = #tpu.pipeline_mode<synchronous>, transform_indices = @transform_2, window_bounds = array<i64: 4, 16, 4>}, {pipeline_mode = #tpu.pipeline_mode<synchronous>, transform_indices = @transform_3, window_bounds = array<i64: 9, 256>}, {transform_indices = @transform_4, window_bounds = array<i64: 1, 8, 256>}]} {
    %c0 = arith.constant 0 : index
    %c0_0 = arith.constant 0 : index
    %c0_1 = arith.constant 0 : index
    %0 = vector.load %arg1[%c0, %c0_0, %c0_1] : memref<1x4x256xf32, #tpu.memory_space<vmem>>, vector<1x4x256xf32>
    %1 = vector.shape_cast %0 : vector<1x4x256xf32> to vector<4x256xf32>
    %cst = arith.constant 0.000000e+00 : f32
    %2 = vector.broadcast %cst : f32 to vector<4x256xf32>
    %3 = tpu.concatenate %1, %2 in 0 : vector<4x256xf32>, vector<4x256xf32> -> vector<8x256xf32>
    %c0_2 = arith.constant 0 : index
    %c0_3 = arith.constant 0 : index
    %4 = vector.load %arg6[%c0_2, %c0_3] : memref<40x256xf32, #tpu.memory_space<vmem>>, vector<8x256xf32>
    tpu.vector_store %arg6[%c0_2, %c0_3], %3 {strides = array<i32>} : memref<40x256xf32, #tpu.memory_space<vmem>>, vector<8x256xf32>,
    %c0_4 = arith.constant 0 : index
    %c0_5 = arith.constant 0 : index
    %5 = vector.load %arg6[%c0_4, %c0_5] : memref<40x256xf32, #tpu.memory_space<vmem>>, vector<8x256xf32>
    %6 = vector.extract_strided_slice %5 {offsets = [0, 239], sizes = [8, 17], strides = [1, 1]} : vector<8x256xf32> to vector<8x17xf32>
    %7 = vector.extract_strided_slice %5 {offsets = [0, 0], sizes = [8, 239], strides = [1, 1]} : vector<8x256xf32> to vector<8x239xf32>
    %8 = tpu.concatenate %6, %7 in 1 : vector<8x17xf32>, vector<8x239xf32> -> vector<8x256xf32>
    %c0_6 = arith.constant 0 : index
    %c0_7 = arith.constant 0 : index
    %9 = vector.load %arg4[%c0_6, %c0_7] : memref<9x256xf32, #tpu.memory_space<vmem>>, vector<1x256xf32>
    %10 = vector.broadcast %9 : vector<1x256xf32> to vector<8x256xf32>
    %11 = arith.mulf %8, %10 : vector<8x256xf32>
    %12 = vector.extract_strided_slice %5 {offsets = [0, 240], sizes = [8, 16], strides = [1, 1]} : vector<8x256xf32> to vector<8x16xf32>
    %13 = vector.extract_strided_slice %5 {offsets = [0, 0], sizes = [8, 240], strides = [1, 1]} : vector<8x256xf32> to vector<8x240xf32>
    %14 = tpu.concatenate %12, %13 in 1 : vector<8x16xf32>, vector<8x240xf32> -> vector<8x256xf32>
    %c1 = arith.constant 1 : index
    %c0_8 = arith.constant 0 : index
    %15 = vector.load %arg4[%c1, %c0_8] : memref<9x256xf32, #tpu.memory_space<vmem>>, vector<1x256xf32>
    %16 = vector.broadcast %15 : vector<1x256xf32> to vector<8x256xf32>
    %17 = arith.mulf %14, %16 : vector<8x256xf32>
    %18 = vector.extract_strided_slice %5 {offsets = [0, 241], sizes = [8, 15], strides = [1, 1]} : vector<8x256xf32> to vector<8x15xf32>
    %19 = vector.extract_strided_slice %5 {offsets = [0, 0], sizes = [8, 241], strides = [1, 1]} : vector<8x256xf32> to vector<8x241xf32>
    %20 = tpu.concatenate %18, %19 in 1 : vector<8x15xf32>, vector<8x241xf32> -> vector<8x256xf32>
    %c2 = arith.constant 2 : index
    %c0_9 = arith.constant 0 : index
    %21 = vector.load %arg4[%c2, %c0_9] : memref<9x256xf32, #tpu.memory_space<vmem>>, vector<1x256xf32>
    %22 = vector.broadcast %21 : vector<1x256xf32> to vector<8x256xf32>
    %23 = arith.mulf %20, %22 : vector<8x256xf32>
    %24 = vector.extract_strided_slice %5 {offsets = [0, 255], sizes = [8, 1], strides = [1, 1]} : vector<8x256xf32> to vector<8x1xf32>
    %25 = vector.extract_strided_slice %5 {offsets = [0, 0], sizes = [8, 255], strides = [1, 1]} : vector<8x256xf32> to vector<8x255xf32>
    %26 = tpu.concatenate %24, %25 in 1 : vector<8x1xf32>, vector<8x255xf32> -> vector<8x256xf32>
    %c3 = arith.constant 3 : index
    %c0_10 = arith.constant 0 : index
    %27 = vector.load %arg4[%c3, %c0_10] : memref<9x256xf32, #tpu.memory_space<vmem>>, vector<1x256xf32>
    %28 = vector.broadcast %27 : vector<1x256xf32> to vector<8x256xf32>
    %29 = arith.mulf %26, %28 : vector<8x256xf32>
    %30 = vector.extract_strided_slice %5 {offsets = [0, 1], sizes = [8, 255], strides = [1, 1]} : vector<8x256xf32> to vector<8x255xf32>
    %31 = vector.extract_strided_slice %5 {offsets = [0, 0], sizes = [8, 1], strides = [1, 1]} : vector<8x256xf32> to vector<8x1xf32>
    %32 = tpu.concatenate %30, %31 in 1 : vector<8x255xf32>, vector<8x1xf32> -> vector<8x256xf32>
    %c5 = arith.constant 5 : index
    %c0_11 = arith.constant 0 : index
    %33 = vector.load %arg4[%c5, %c0_11] : memref<9x256xf32, #tpu.memory_space<vmem>>, vector<1x256xf32>
    %34 = vector.broadcast %33 : vector<1x256xf32> to vector<8x256xf32>
    %35 = arith.mulf %32, %34 : vector<8x256xf32>
    %36 = vector.extract_strided_slice %5 {offsets = [0, 15], sizes = [8, 241], strides = [1, 1]} : vector<8x256xf32> to vector<8x241xf32>
    %37 = vector.extract_strided_slice %5 {offsets = [0, 0], sizes = [8, 15], strides = [1, 1]} : vector<8x256xf32> to vector<8x15xf32>
    %38 = tpu.concatenate %36, %37 in 1 : vector<8x241xf32>, vector<8x15xf32> -> vector<8x256xf32>
    %c6 = arith.constant 6 : index
    %c0_12 = arith.constant 0 : index
    %39 = vector.load %arg4[%c6, %c0_12] : memref<9x256xf32, #tpu.memory_space<vmem>>, vector<1x256xf32>
    %40 = vector.broadcast %39 : vector<1x256xf32> to vector<8x256xf32>
    %41 = arith.mulf %38, %40 : vector<8x256xf32>
    %42 = vector.extract_strided_slice %5 {offsets = [0, 16], sizes = [8, 240], strides = [1, 1]} : vector<8x256xf32> to vector<8x240xf32>
    %43 = vector.extract_strided_slice %5 {offsets = [0, 0], sizes = [8, 16], strides = [1, 1]} : vector<8x256xf32> to vector<8x16xf32>
    %44 = tpu.concatenate %42, %43 in 1 : vector<8x240xf32>, vector<8x16xf32> -> vector<8x256xf32>
    %c7 = arith.constant 7 : index
    %c0_13 = arith.constant 0 : index
    %45 = vector.load %arg4[%c7, %c0_13] : memref<9x256xf32, #tpu.memory_space<vmem>>, vector<1x256xf32>
    %46 = vector.broadcast %45 : vector<1x256xf32> to vector<8x256xf32>
    %47 = arith.mulf %44, %46 : vector<8x256xf32>
    %48 = vector.extract_strided_slice %5 {offsets = [0, 17], sizes = [8, 239], strides = [1, 1]} : vector<8x256xf32> to vector<8x239xf32>
    %49 = vector.extract_strided_slice %5 {offsets = [0, 0], sizes = [8, 17], strides = [1, 1]} : vector<8x256xf32> to vector<8x17xf32>
    %50 = tpu.concatenate %48, %49 in 1 : vector<8x239xf32>, vector<8x17xf32> -> vector<8x256xf32>
    %c8 = arith.constant 8 : index
    %c0_14 = arith.constant 0 : index
    %51 = vector.load %arg4[%c8, %c0_14] : memref<9x256xf32, #tpu.memory_space<vmem>>, vector<1x256xf32>
    %52 = vector.broadcast %51 : vector<1x256xf32> to vector<8x256xf32>
    %53 = arith.mulf %50, %52 : vector<8x256xf32>
    %54 = tpu.concatenate %11, %17, %23, %29, %5, %35, %41, %47, %53 in 0 : vector<8x256xf32>, vector<8x256xf32>, vector<8x256xf32>, vector<8x256xf32>, vector<8x256xf32>, vector<8x256xf32>, vector<8x256xf32>, vector<8x256xf32>, vector<8x256xf32> -> vector<72x256xf32>
    %c0_15 = arith.constant 0 : index
    %c0_16 = arith.constant 0 : index
    %c0_17 = arith.constant 0 : index
    %55 = vector.load %arg2[%c0_15, %c0_16, %c0_17] : memref<4x16x216xf32, #tpu.memory_space<vmem>>, vector<1x16x216xf32>
    %56 = vector.shape_cast %55 : vector<1x16x216xf32> to vector<16x216xf32>
    %57 = vector.extract_strided_slice %56 {offsets = [0, 0], sizes = [16, 72], strides = [1, 1]} : vector<16x216xf32> to vector<16x72xf32>
    %cst_18 = arith.constant dense<0.000000e+00> : vector<16x256xf32>
    %58 = tpu.matmul %57, %54, %cst_18 {dimension_numbers = #tpu.dot_dimension_numbers<[1], [0], [0], [1], [0, 0, 1, 1], [], []>} : vector<16x72xf32>, vector<72x256xf32>, vector<16x256xf32> -> vector<16x256xf32>
    %c0_19 = arith.constant 0 : index
    %c0_20 = arith.constant 0 : index
    %c0_21 = arith.constant 0 : index
    %59 = vector.load %arg3[%c0_19, %c0_20, %c0_21] : memref<4x16x4xf32, #tpu.memory_space<vmem>>, vector<1x16x4xf32>
    %60 = vector.shape_cast %59 : vector<1x16x4xf32> to vector<16x4xf32>
    %61 = vector.extract_strided_slice %60 {offsets = [0, 0], sizes = [16, 1], strides = [1, 1]} : vector<16x4xf32> to vector<16x1xf32>
    %62 = vector.extract_strided_slice %60 {offsets = [0, 1], sizes = [16, 1], strides = [1, 1]} : vector<16x4xf32> to vector<16x1xf32>
    %63 = vector.extract_strided_slice %60 {offsets = [0, 2], sizes = [16, 1], strides = [1, 1]} : vector<16x4xf32> to vector<16x1xf32>
    %64 = vector.broadcast %61 : vector<16x1xf32> to vector<16x256xf32>
    %65 = arith.addf %58, %64 : vector<16x256xf32>
    %cst_22 = arith.constant dense<0.000000e+00> : vector<16xf32>
    %66 = vector.multi_reduction <add>, %65, %cst_22 [1] : vector<16x256xf32> to vector<16xf32>
    %67 = vector.shape_cast %66 : vector<16xf32> to vector<16x1xf32>
    %cst_23 = arith.constant 2.560000e+02 : f32
    %68 = vector.broadcast %cst_23 : f32 to vector<16x1xf32>
    %69 = arith.divf %67, %68 : vector<16x1xf32>
    %70 = vector.broadcast %69 : vector<16x1xf32> to vector<16x256xf32>
    %71 = arith.subf %65, %70 : vector<16x256xf32>
    %72 = arith.mulf %71, %71 : vector<16x256xf32>
    %cst_24 = arith.constant dense<0.000000e+00> : vector<16xf32>
    %73 = vector.multi_reduction <add>, %72, %cst_24 [1] : vector<16x256xf32> to vector<16xf32>
    %74 = vector.shape_cast %73 : vector<16xf32> to vector<16x1xf32>
    %cst_25 = arith.constant 2.560000e+02 : f32
    %75 = vector.broadcast %cst_25 : f32 to vector<16x1xf32>
    %76 = arith.divf %74, %75 : vector<16x1xf32>
    %cst_26 = arith.constant 9.99999974E-6 : f32
    %77 = vector.broadcast %cst_26 : f32 to vector<16x1xf32>
    %78 = arith.addf %76, %77 : vector<16x1xf32>
    %79 = math.rsqrt %78 : vector<16x1xf32>
    %80 = vector.broadcast %79 : vector<16x1xf32> to vector<16x256xf32>
    %81 = arith.mulf %71, %80 : vector<16x256xf32>
    %82 = vector.broadcast %62 : vector<16x1xf32> to vector<16x256xf32>
    %83 = arith.mulf %81, %82 : vector<16x256xf32>
    %84 = vector.broadcast %63 : vector<16x1xf32> to vector<16x256xf32>
    %85 = arith.addf %83, %84 : vector<16x256xf32>
    %cst_27 = arith.constant 0.000000e+00 : f32
    %86 = vector.broadcast %cst_27 : f32 to vector<16x256xf32>
    %87 = arith.cmpf ogt, %85, %86 : vector<16x256xf32>
    %cst_28 = arith.constant 0.00999999977 : f32
    %88 = vector.broadcast %cst_28 : f32 to vector<16x256xf32>
    %89 = arith.mulf %88, %85 : vector<16x256xf32>
    %90 = arith.select %87, %85, %89 : vector<16x256xi1>, vector<16x256xf32>
    %c8_29 = arith.constant 8 : index
    %c0_30 = arith.constant 0 : index
    %91 = vector.load %arg6[%c8_29, %c0_30] : memref<40x256xf32, #tpu.memory_space<vmem>>, vector<16x256xf32>
    tpu.vector_store %arg6[%c8_29, %c0_30], %90 {strides = array<i32>} : memref<40x256xf32, #tpu.memory_space<vmem>>, vector<16x256xf32>,
    %c0_31 = arith.constant 0 : index
    %c0_32 = arith.constant 0 : index
    %92 = vector.load %arg6[%c0_31, %c0_32] : memref<40x256xf32, #tpu.memory_space<vmem>>, vector<24x256xf32>
    %93 = vector.extract_strided_slice %92 {offsets = [0, 239], sizes = [24, 17], strides = [1, 1]} : vector<24x256xf32> to vector<24x17xf32>
    %94 = vector.extract_strided_slice %92 {offsets = [0, 0], sizes = [24, 239], strides = [1, 1]} : vector<24x256xf32> to vector<24x239xf32>
    %95 = tpu.concatenate %93, %94 in 1 : vector<24x17xf32>, vector<24x239xf32> -> vector<24x256xf32>
    %c0_33 = arith.constant 0 : index
    %c0_34 = arith.constant 0 : index
    %96 = vector.load %arg4[%c0_33, %c0_34] : memref<9x256xf32, #tpu.memory_space<vmem>>, vector<1x256xf32>
    %97 = vector.broadcast %96 : vector<1x256xf32> to vector<24x256xf32>
    %98 = arith.mulf %95, %97 : vector<24x256xf32>
    %99 = vector.extract_strided_slice %92 {offsets = [0, 240], sizes = [24, 16], strides = [1, 1]} : vector<24x256xf32> to vector<24x16xf32>
    %100 = vector.extract_strided_slice %92 {offsets = [0, 0], sizes = [24, 240], strides = [1, 1]} : vector<24x256xf32> to vector<24x240xf32>
    %101 = tpu.concatenate %99, %100 in 1 : vector<24x16xf32>, vector<24x240xf32> -> vector<24x256xf32>
    %c1_35 = arith.constant 1 : index
    %c0_36 = arith.constant 0 : index
    %102 = vector.load %arg4[%c1_35, %c0_36] : memref<9x256xf32, #tpu.memory_space<vmem>>, vector<1x256xf32>
    %103 = vector.broadcast %102 : vector<1x256xf32> to vector<24x256xf32>
    %104 = arith.mulf %101, %103 : vector<24x256xf32>
    %105 = vector.extract_strided_slice %92 {offsets = [0, 241], sizes = [24, 15], strides = [1, 1]} : vector<24x256xf32> to vector<24x15xf32>
    %106 = vector.extract_strided_slice %92 {offsets = [0, 0], sizes = [24, 241], strides = [1, 1]} : vector<24x256xf32> to vector<24x241xf32>
    %107 = tpu.concatenate %105, %106 in 1 : vector<24x15xf32>, vector<24x241xf32> -> vector<24x256xf32>
    %c2_37 = arith.constant 2 : index
    %c0_38 = arith.constant 0 : index
    %108 = vector.load %arg4[%c2_37, %c0_38] : memref<9x256xf32, #tpu.memory_space<vmem>>, vector<1x256xf32>
    %109 = vector.broadcast %108 : vector<1x256xf32> to vector<24x256xf32>
    %110 = arith.mulf %107, %109 : vector<24x256xf32>
    %111 = vector.extract_strided_slice %92 {offsets = [0, 255], sizes = [24, 1], strides = [1, 1]} : vector<24x256xf32> to vector<24x1xf32>
    %112 = vector.extract_strided_slice %92 {offsets = [0, 0], sizes = [24, 255], strides = [1, 1]} : vector<24x256xf32> to vector<24x255xf32>
    %113 = tpu.concatenate %111, %112 in 1 : vector<24x1xf32>, vector<24x255xf32> -> vector<24x256xf32>
    %c3_39 = arith.constant 3 : index
    %c0_40 = arith.constant 0 : index
    %114 = vector.load %arg4[%c3_39, %c0_40] : memref<9x256xf32, #tpu.memory_space<vmem>>, vector<1x256xf32>
    %115 = vector.broadcast %114 : vector<1x256xf32> to vector<24x256xf32>
    %116 = arith.mulf %113, %115 : vector<24x256xf32>
    %117 = vector.extract_strided_slice %92 {offsets = [0, 1], sizes = [24, 255], strides = [1, 1]} : vector<24x256xf32> to vector<24x255xf32>
    %118 = vector.extract_strided_slice %92 {offsets = [0, 0], sizes = [24, 1], strides = [1, 1]} : vector<24x256xf32> to vector<24x1xf32>
    %119 = tpu.concatenate %117, %118 in 1 : vector<24x255xf32>, vector<24x1xf32> -> vector<24x256xf32>
    %c5_41 = arith.constant 5 : index
    %c0_42 = arith.constant 0 : index
    %120 = vector.load %arg4[%c5_41, %c0_42] : memref<9x256xf32, #tpu.memory_space<vmem>>, vector<1x256xf32>
    %121 = vector.broadcast %120 : vector<1x256xf32> to vector<24x256xf32>
    %122 = arith.mulf %119, %121 : vector<24x256xf32>
    %123 = vector.extract_strided_slice %92 {offsets = [0, 15], sizes = [24, 241], strides = [1, 1]} : vector<24x256xf32> to vector<24x241xf32>
    %124 = vector.extract_strided_slice %92 {offsets = [0, 0], sizes = [24, 15], strides = [1, 1]} : vector<24x256xf32> to vector<24x15xf32>
    %125 = tpu.concatenate %123, %124 in 1 : vector<24x241xf32>, vector<24x15xf32> -> vector<24x256xf32>
    %c6_43 = arith.constant 6 : index
    %c0_44 = arith.constant 0 : index
    %126 = vector.load %arg4[%c6_43, %c0_44] : memref<9x256xf32, #tpu.memory_space<vmem>>, vector<1x256xf32>
    %127 = vector.broadcast %126 : vector<1x256xf32> to vector<24x256xf32>
    %128 = arith.mulf %125, %127 : vector<24x256xf32>
    %129 = vector.extract_strided_slice %92 {offsets = [0, 16], sizes = [24, 240], strides = [1, 1]} : vector<24x256xf32> to vector<24x240xf32>
    %130 = vector.extract_strided_slice %92 {offsets = [0, 0], sizes = [24, 16], strides = [1, 1]} : vector<24x256xf32> to vector<24x16xf32>
    %131 = tpu.concatenate %129, %130 in 1 : vector<24x240xf32>, vector<24x16xf32> -> vector<24x256xf32>
    %c7_45 = arith.constant 7 : index
    %c0_46 = arith.constant 0 : index
    %132 = vector.load %arg4[%c7_45, %c0_46] : memref<9x256xf32, #tpu.memory_space<vmem>>, vector<1x256xf32>
    %133 = vector.broadcast %132 : vector<1x256xf32> to vector<24x256xf32>
    %134 = arith.mulf %131, %133 : vector<24x256xf32>
    %135 = vector.extract_strided_slice %92 {offsets = [0, 17], sizes = [24, 239], strides = [1, 1]} : vector<24x256xf32> to vector<24x239xf32>
    %136 = vector.extract_strided_slice %92 {offsets = [0, 0], sizes = [24, 17], strides = [1, 1]} : vector<24x256xf32> to vector<24x17xf32>
    %137 = tpu.concatenate %135, %136 in 1 : vector<24x239xf32>, vector<24x17xf32> -> vector<24x256xf32>
    %c8_47 = arith.constant 8 : index
    %c0_48 = arith.constant 0 : index
    %138 = vector.load %arg4[%c8_47, %c0_48] : memref<9x256xf32, #tpu.memory_space<vmem>>, vector<1x256xf32>
    %139 = vector.broadcast %138 : vector<1x256xf32> to vector<24x256xf32>
    %140 = arith.mulf %137, %139 : vector<24x256xf32>
    %141 = tpu.concatenate %98, %104, %110, %116, %92, %122, %128, %134, %140 in 0 : vector<24x256xf32>, vector<24x256xf32>, vector<24x256xf32>, vector<24x256xf32>, vector<24x256xf32>, vector<24x256xf32>, vector<24x256xf32>, vector<24x256xf32>, vector<24x256xf32> -> vector<216x256xf32>
    %c1_49 = arith.constant 1 : index
    %c0_50 = arith.constant 0 : index
    %c0_51 = arith.constant 0 : index
    %142 = vector.load %arg2[%c1_49, %c0_50, %c0_51] : memref<4x16x216xf32, #tpu.memory_space<vmem>>, vector<1x16x216xf32>
    %143 = vector.shape_cast %142 : vector<1x16x216xf32> to vector<16x216xf32>
    %cst_52 = arith.constant dense<0.000000e+00> : vector<16x256xf32>
    %144 = tpu.matmul %143, %141, %cst_52 {dimension_numbers = #tpu.dot_dimension_numbers<[1], [0], [0], [1], [0, 0, 1, 1], [], []>} : vector<16x216xf32>, vector<216x256xf32>, vector<16x256xf32> -> vector<16x256xf32>
    %c1_53 = arith.constant 1 : index
    %c0_54 = arith.constant 0 : index
    %c0_55 = arith.constant 0 : index
    %145 = vector.load %arg3[%c1_53, %c0_54, %c0_55] : memref<4x16x4xf32, #tpu.memory_space<vmem>>, vector<1x16x4xf32>
    %146 = vector.shape_cast %145 : vector<1x16x4xf32> to vector<16x4xf32>
    %147 = vector.extract_strided_slice %146 {offsets = [0, 0], sizes = [16, 1], strides = [1, 1]} : vector<16x4xf32> to vector<16x1xf32>
    %148 = vector.extract_strided_slice %146 {offsets = [0, 1], sizes = [16, 1], strides = [1, 1]} : vector<16x4xf32> to vector<16x1xf32>
    %149 = vector.extract_strided_slice %146 {offsets = [0, 2], sizes = [16, 1], strides = [1, 1]} : vector<16x4xf32> to vector<16x1xf32>
    %150 = vector.broadcast %147 : vector<16x1xf32> to vector<16x256xf32>
    %151 = arith.addf %144, %150 : vector<16x256xf32>
    %cst_56 = arith.constant dense<0.000000e+00> : vector<16xf32>
    %152 = vector.multi_reduction <add>, %151, %cst_56 [1] : vector<16x256xf32> to vector<16xf32>
    %153 = vector.shape_cast %152 : vector<16xf32> to vector<16x1xf32>
    %cst_57 = arith.constant 2.560000e+02 : f32
    %154 = vector.broadcast %cst_57 : f32 to vector<16x1xf32>
    %155 = arith.divf %153, %154 : vector<16x1xf32>
    %156 = vector.broadcast %155 : vector<16x1xf32> to vector<16x256xf32>
    %157 = arith.subf %151, %156 : vector<16x256xf32>
    %158 = arith.mulf %157, %157 : vector<16x256xf32>
    %cst_58 = arith.constant dense<0.000000e+00> : vector<16xf32>
    %159 = vector.multi_reduction <add>, %158, %cst_58 [1] : vector<16x256xf32> to vector<16xf32>
    %160 = vector.shape_cast %159 : vector<16xf32> to vector<16x1xf32>
    %cst_59 = arith.constant 2.560000e+02 : f32
    %161 = vector.broadcast %cst_59 : f32 to vector<16x1xf32>
    %162 = arith.divf %160, %161 : vector<16x1xf32>
    %cst_60 = arith.constant 9.99999974E-6 : f32
    %163 = vector.broadcast %cst_60 : f32 to vector<16x1xf32>
    %164 = arith.addf %162, %163 : vector<16x1xf32>
    %165 = math.rsqrt %164 : vector<16x1xf32>
    %166 = vector.broadcast %165 : vector<16x1xf32> to vector<16x256xf32>
    %167 = arith.mulf %157, %166 : vector<16x256xf32>
    %168 = vector.broadcast %148 : vector<16x1xf32> to vector<16x256xf32>
    %169 = arith.mulf %167, %168 : vector<16x256xf32>
    %170 = vector.broadcast %149 : vector<16x1xf32> to vector<16x256xf32>
    %171 = arith.addf %169, %170 : vector<16x256xf32>
    %cst_61 = arith.constant 0.000000e+00 : f32
    %172 = vector.broadcast %cst_61 : f32 to vector<16x256xf32>
    %173 = arith.cmpf ogt, %171, %172 : vector<16x256xf32>
    %cst_62 = arith.constant 0.00999999977 : f32
    %174 = vector.broadcast %cst_62 : f32 to vector<16x256xf32>
    %175 = arith.mulf %174, %171 : vector<16x256xf32>
    %176 = arith.select %173, %171, %175 : vector<16x256xi1>, vector<16x256xf32>
    %c24 = arith.constant 24 : index
    %c0_63 = arith.constant 0 : index
    %177 = vector.load %arg6[%c24, %c0_63] : memref<40x256xf32, #tpu.memory_space<vmem>>, vector<16x256xf32>
    tpu.vector_store %arg6[%c24, %c0_63], %176 {strides = array<i32>} : memref<40x256xf32, #tpu.memory_space<vmem>>, vector<16x256xf32>,
    %c2_64 = arith.constant 2 : index
    %c0_65 = arith.constant 0 : index
    %c0_66 = arith.constant 0 : index
    %178 = vector.load %arg2[%c2_64, %c0_65, %c0_66] : memref<4x16x216xf32, #tpu.memory_space<vmem>>, vector<1x16x216xf32>
    %179 = vector.shape_cast %178 : vector<1x16x216xf32> to vector<16x216xf32>
    %180 = vector.extract_strided_slice %179 {offsets = [0, 0], sizes = [16, 40], strides = [1, 1]} : vector<16x216xf32> to vector<16x40xf32>
    %c0_67 = arith.constant 0 : index
    %c0_68 = arith.constant 0 : index
    %181 = vector.load %arg6[%c0_67, %c0_68] : memref<40x256xf32, #tpu.memory_space<vmem>>, vector<40x256xf32>
    %cst_69 = arith.constant dense<0.000000e+00> : vector<16x256xf32>
    %182 = tpu.matmul %180, %181, %cst_69 {dimension_numbers = #tpu.dot_dimension_numbers<[1], [0], [0], [1], [0, 0, 1, 1], [], []>} : vector<16x40xf32>, vector<40x256xf32>, vector<16x256xf32> -> vector<16x256xf32>
    %c2_70 = arith.constant 2 : index
    %c0_71 = arith.constant 0 : index
    %c0_72 = arith.constant 0 : index
    %183 = vector.load %arg3[%c2_70, %c0_71, %c0_72] : memref<4x16x4xf32, #tpu.memory_space<vmem>>, vector<1x16x4xf32>
    %184 = vector.shape_cast %183 : vector<1x16x4xf32> to vector<16x4xf32>
    %185 = vector.extract_strided_slice %184 {offsets = [0, 0], sizes = [16, 1], strides = [1, 1]} : vector<16x4xf32> to vector<16x1xf32>
    %186 = vector.extract_strided_slice %184 {offsets = [0, 1], sizes = [16, 1], strides = [1, 1]} : vector<16x4xf32> to vector<16x1xf32>
    %187 = vector.extract_strided_slice %184 {offsets = [0, 2], sizes = [16, 1], strides = [1, 1]} : vector<16x4xf32> to vector<16x1xf32>
    %188 = vector.broadcast %185 : vector<16x1xf32> to vector<16x256xf32>
    %189 = arith.addf %182, %188 : vector<16x256xf32>
    %cst_73 = arith.constant dense<0.000000e+00> : vector<16xf32>
    %190 = vector.multi_reduction <add>, %189, %cst_73 [1] : vector<16x256xf32> to vector<16xf32>
    %191 = vector.shape_cast %190 : vector<16xf32> to vector<16x1xf32>
    %cst_74 = arith.constant 2.560000e+02 : f32
    %192 = vector.broadcast %cst_74 : f32 to vector<16x1xf32>
    %193 = arith.divf %191, %192 : vector<16x1xf32>
    %194 = vector.broadcast %193 : vector<16x1xf32> to vector<16x256xf32>
    %195 = arith.subf %189, %194 : vector<16x256xf32>
    %196 = arith.mulf %195, %195 : vector<16x256xf32>
    %cst_75 = arith.constant dense<0.000000e+00> : vector<16xf32>
    %197 = vector.multi_reduction <add>, %196, %cst_75 [1] : vector<16x256xf32> to vector<16xf32>
    %198 = vector.shape_cast %197 : vector<16xf32> to vector<16x1xf32>
    %cst_76 = arith.constant 2.560000e+02 : f32
    %199 = vector.broadcast %cst_76 : f32 to vector<16x1xf32>
    %200 = arith.divf %198, %199 : vector<16x1xf32>
    %cst_77 = arith.constant 9.99999974E-6 : f32
    %201 = vector.broadcast %cst_77 : f32 to vector<16x1xf32>
    %202 = arith.addf %200, %201 : vector<16x1xf32>
    %203 = math.rsqrt %202 : vector<16x1xf32>
    %204 = vector.broadcast %203 : vector<16x1xf32> to vector<16x256xf32>
    %205 = arith.mulf %195, %204 : vector<16x256xf32>
    %206 = vector.broadcast %186 : vector<16x1xf32> to vector<16x256xf32>
    %207 = arith.mulf %205, %206 : vector<16x256xf32>
    %208 = vector.broadcast %187 : vector<16x1xf32> to vector<16x256xf32>
    %209 = arith.addf %207, %208 : vector<16x256xf32>
    %cst_78 = arith.constant 0.000000e+00 : f32
    %210 = vector.broadcast %cst_78 : f32 to vector<16x256xf32>
    %211 = arith.cmpf ogt, %209, %210 : vector<16x256xf32>
    %cst_79 = arith.constant 0.00999999977 : f32
    %212 = vector.broadcast %cst_79 : f32 to vector<16x256xf32>
    %213 = arith.mulf %212, %209 : vector<16x256xf32>
    %214 = arith.select %211, %209, %213 : vector<16x256xi1>, vector<16x256xf32>
    %215 = vector.extract_strided_slice %214 {offsets = [0, 0], sizes = [8, 256], strides = [1, 1]} : vector<16x256xf32> to vector<8x256xf32>
    %216 = vector.extract_strided_slice %215 {offsets = [0, 239], sizes = [8, 17], strides = [1, 1]} : vector<8x256xf32> to vector<8x17xf32>
    %217 = vector.extract_strided_slice %215 {offsets = [0, 0], sizes = [8, 239], strides = [1, 1]} : vector<8x256xf32> to vector<8x239xf32>
    %218 = tpu.concatenate %216, %217 in 1 : vector<8x17xf32>, vector<8x239xf32> -> vector<8x256xf32>
    %c0_80 = arith.constant 0 : index
    %c0_81 = arith.constant 0 : index
    %219 = vector.load %arg4[%c0_80, %c0_81] : memref<9x256xf32, #tpu.memory_space<vmem>>, vector<1x256xf32>
    %220 = vector.broadcast %219 : vector<1x256xf32> to vector<8x256xf32>
    %221 = arith.mulf %218, %220 : vector<8x256xf32>
    %222 = vector.extract_strided_slice %215 {offsets = [0, 240], sizes = [8, 16], strides = [1, 1]} : vector<8x256xf32> to vector<8x16xf32>
    %223 = vector.extract_strided_slice %215 {offsets = [0, 0], sizes = [8, 240], strides = [1, 1]} : vector<8x256xf32> to vector<8x240xf32>
    %224 = tpu.concatenate %222, %223 in 1 : vector<8x16xf32>, vector<8x240xf32> -> vector<8x256xf32>
    %c1_82 = arith.constant 1 : index
    %c0_83 = arith.constant 0 : index
    %225 = vector.load %arg4[%c1_82, %c0_83] : memref<9x256xf32, #tpu.memory_space<vmem>>, vector<1x256xf32>
    %226 = vector.broadcast %225 : vector<1x256xf32> to vector<8x256xf32>
    %227 = arith.mulf %224, %226 : vector<8x256xf32>
    %228 = vector.extract_strided_slice %215 {offsets = [0, 241], sizes = [8, 15], strides = [1, 1]} : vector<8x256xf32> to vector<8x15xf32>
    %229 = vector.extract_strided_slice %215 {offsets = [0, 0], sizes = [8, 241], strides = [1, 1]} : vector<8x256xf32> to vector<8x241xf32>
    %230 = tpu.concatenate %228, %229 in 1 : vector<8x15xf32>, vector<8x241xf32> -> vector<8x256xf32>
    %c2_84 = arith.constant 2 : index
    %c0_85 = arith.constant 0 : index
    %231 = vector.load %arg4[%c2_84, %c0_85] : memref<9x256xf32, #tpu.memory_space<vmem>>, vector<1x256xf32>
    %232 = vector.broadcast %231 : vector<1x256xf32> to vector<8x256xf32>
    %233 = arith.mulf %230, %232 : vector<8x256xf32>
    %234 = vector.extract_strided_slice %215 {offsets = [0, 255], sizes = [8, 1], strides = [1, 1]} : vector<8x256xf32> to vector<8x1xf32>
    %235 = vector.extract_strided_slice %215 {offsets = [0, 0], sizes = [8, 255], strides = [1, 1]} : vector<8x256xf32> to vector<8x255xf32>
    %236 = tpu.concatenate %234, %235 in 1 : vector<8x1xf32>, vector<8x255xf32> -> vector<8x256xf32>
    %c3_86 = arith.constant 3 : index
    %c0_87 = arith.constant 0 : index
    %237 = vector.load %arg4[%c3_86, %c0_87] : memref<9x256xf32, #tpu.memory_space<vmem>>, vector<1x256xf32>
    %238 = vector.broadcast %237 : vector<1x256xf32> to vector<8x256xf32>
    %239 = arith.mulf %236, %238 : vector<8x256xf32>
    %240 = vector.extract_strided_slice %215 {offsets = [0, 1], sizes = [8, 255], strides = [1, 1]} : vector<8x256xf32> to vector<8x255xf32>
    %241 = vector.extract_strided_slice %215 {offsets = [0, 0], sizes = [8, 1], strides = [1, 1]} : vector<8x256xf32> to vector<8x1xf32>
    %242 = tpu.concatenate %240, %241 in 1 : vector<8x255xf32>, vector<8x1xf32> -> vector<8x256xf32>
    %c5_88 = arith.constant 5 : index
    %c0_89 = arith.constant 0 : index
    %243 = vector.load %arg4[%c5_88, %c0_89] : memref<9x256xf32, #tpu.memory_space<vmem>>, vector<1x256xf32>
    %244 = vector.broadcast %243 : vector<1x256xf32> to vector<8x256xf32>
    %245 = arith.mulf %242, %244 : vector<8x256xf32>
    %246 = vector.extract_strided_slice %215 {offsets = [0, 15], sizes = [8, 241], strides = [1, 1]} : vector<8x256xf32> to vector<8x241xf32>
    %247 = vector.extract_strided_slice %215 {offsets = [0, 0], sizes = [8, 15], strides = [1, 1]} : vector<8x256xf32> to vector<8x15xf32>
    %248 = tpu.concatenate %246, %247 in 1 : vector<8x241xf32>, vector<8x15xf32> -> vector<8x256xf32>
    %c6_90 = arith.constant 6 : index
    %c0_91 = arith.constant 0 : index
    %249 = vector.load %arg4[%c6_90, %c0_91] : memref<9x256xf32, #tpu.memory_space<vmem>>, vector<1x256xf32>
    %250 = vector.broadcast %249 : vector<1x256xf32> to vector<8x256xf32>
    %251 = arith.mulf %248, %250 : vector<8x256xf32>
    %252 = vector.extract_strided_slice %215 {offsets = [0, 16], sizes = [8, 240], strides = [1, 1]} : vector<8x256xf32> to vector<8x240xf32>
    %253 = vector.extract_strided_slice %215 {offsets = [0, 0], sizes = [8, 16], strides = [1, 1]} : vector<8x256xf32> to vector<8x16xf32>
    %254 = tpu.concatenate %252, %253 in 1 : vector<8x240xf32>, vector<8x16xf32> -> vector<8x256xf32>
    %c7_92 = arith.constant 7 : index
    %c0_93 = arith.constant 0 : index
    %255 = vector.load %arg4[%c7_92, %c0_93] : memref<9x256xf32, #tpu.memory_space<vmem>>, vector<1x256xf32>
    %256 = vector.broadcast %255 : vector<1x256xf32> to vector<8x256xf32>
    %257 = arith.mulf %254, %256 : vector<8x256xf32>
    %258 = vector.extract_strided_slice %215 {offsets = [0, 17], sizes = [8, 239], strides = [1, 1]} : vector<8x256xf32> to vector<8x239xf32>
    %259 = vector.extract_strided_slice %215 {offsets = [0, 0], sizes = [8, 17], strides = [1, 1]} : vector<8x256xf32> to vector<8x17xf32>
    %260 = tpu.concatenate %258, %259 in 1 : vector<8x239xf32>, vector<8x17xf32> -> vector<8x256xf32>
    %c8_94 = arith.constant 8 : index
    %c0_95 = arith.constant 0 : index
    %261 = vector.load %arg4[%c8_94, %c0_95] : memref<9x256xf32, #tpu.memory_space<vmem>>, vector<1x256xf32>
    %262 = vector.broadcast %261 : vector<1x256xf32> to vector<8x256xf32>
    %263 = arith.mulf %260, %262 : vector<8x256xf32>
    %264 = tpu.concatenate %221, %227, %233, %239, %215, %245, %251, %257, %263 in 0 : vector<8x256xf32>, vector<8x256xf32>, vector<8x256xf32>, vector<8x256xf32>, vector<8x256xf32>, vector<8x256xf32>, vector<8x256xf32>, vector<8x256xf32>, vector<8x256xf32> -> vector<72x256xf32>
    %c3_96 = arith.constant 3 : index
    %c0_97 = arith.constant 0 : index
    %c0_98 = arith.constant 0 : index
    %265 = vector.load %arg2[%c3_96, %c0_97, %c0_98] : memref<4x16x216xf32, #tpu.memory_space<vmem>>, vector<1x16x216xf32>
    %266 = vector.shape_cast %265 : vector<1x16x216xf32> to vector<16x216xf32>
    %267 = vector.extract_strided_slice %266 {offsets = [0, 0], sizes = [16, 72], strides = [1, 1]} : vector<16x216xf32> to vector<16x72xf32>
    %cst_99 = arith.constant dense<0.000000e+00> : vector<16x256xf32>
    %268 = tpu.matmul %267, %264, %cst_99 {dimension_numbers = #tpu.dot_dimension_numbers<[1], [0], [0], [1], [0, 0, 1, 1], [], []>} : vector<16x72xf32>, vector<72x256xf32>, vector<16x256xf32> -> vector<16x256xf32>
    %c3_100 = arith.constant 3 : index
    %c0_101 = arith.constant 0 : index
    %c0_102 = arith.constant 0 : index
    %269 = vector.load %arg3[%c3_100, %c0_101, %c0_102] : memref<4x16x4xf32, #tpu.memory_space<vmem>>, vector<1x16x4xf32>
    %270 = vector.shape_cast %269 : vector<1x16x4xf32> to vector<16x4xf32>
    %271 = vector.extract_strided_slice %270 {offsets = [0, 0], sizes = [16, 1], strides = [1, 1]} : vector<16x4xf32> to vector<16x1xf32>
    %272 = vector.extract_strided_slice %270 {offsets = [0, 1], sizes = [16, 1], strides = [1, 1]} : vector<16x4xf32> to vector<16x1xf32>
    %273 = vector.extract_strided_slice %270 {offsets = [0, 2], sizes = [16, 1], strides = [1, 1]} : vector<16x4xf32> to vector<16x1xf32>
    %274 = vector.broadcast %271 : vector<16x1xf32> to vector<16x256xf32>
    %275 = arith.addf %268, %274 : vector<16x256xf32>
    %cst_103 = arith.constant dense<0.000000e+00> : vector<16xf32>
    %276 = vector.multi_reduction <add>, %275, %cst_103 [1] : vector<16x256xf32> to vector<16xf32>
    %277 = vector.shape_cast %276 : vector<16xf32> to vector<16x1xf32>
    %cst_104 = arith.constant 2.560000e+02 : f32
    %278 = vector.broadcast %cst_104 : f32 to vector<16x1xf32>
    %279 = arith.divf %277, %278 : vector<16x1xf32>
    %280 = vector.broadcast %279 : vector<16x1xf32> to vector<16x256xf32>
    %281 = arith.subf %275, %280 : vector<16x256xf32>
    %282 = arith.mulf %281, %281 : vector<16x256xf32>
    %cst_105 = arith.constant dense<0.000000e+00> : vector<16xf32>
    %283 = vector.multi_reduction <add>, %282, %cst_105 [1] : vector<16x256xf32> to vector<16xf32>
    %284 = vector.shape_cast %283 : vector<16xf32> to vector<16x1xf32>
    %cst_106 = arith.constant 2.560000e+02 : f32
    %285 = vector.broadcast %cst_106 : f32 to vector<16x1xf32>
    %286 = arith.divf %284, %285 : vector<16x1xf32>
    %cst_107 = arith.constant 9.99999974E-6 : f32
    %287 = vector.broadcast %cst_107 : f32 to vector<16x1xf32>
    %288 = arith.addf %286, %287 : vector<16x1xf32>
    %289 = math.rsqrt %288 : vector<16x1xf32>
    %290 = vector.broadcast %289 : vector<16x1xf32> to vector<16x256xf32>
    %291 = arith.mulf %281, %290 : vector<16x256xf32>
    %292 = vector.broadcast %272 : vector<16x1xf32> to vector<16x256xf32>
    %293 = arith.mulf %291, %292 : vector<16x256xf32>
    %294 = vector.broadcast %273 : vector<16x1xf32> to vector<16x256xf32>
    %295 = arith.addf %293, %294 : vector<16x256xf32>
    %cst_108 = arith.constant 0.000000e+00 : f32
    %296 = vector.broadcast %cst_108 : f32 to vector<16x256xf32>
    %297 = arith.cmpf ogt, %295, %296 : vector<16x256xf32>
    %cst_109 = arith.constant 0.00999999977 : f32
    %298 = vector.broadcast %cst_109 : f32 to vector<16x256xf32>
    %299 = arith.mulf %298, %295 : vector<16x256xf32>
    %300 = arith.select %297, %295, %299 : vector<16x256xi1>, vector<16x256xf32>
    %301 = vector.extract_strided_slice %300 {offsets = [0, 0], sizes = [8, 256], strides = [1, 1]} : vector<16x256xf32> to vector<8x256xf32>
    %c0_110 = arith.constant 0 : index
    %c0_111 = arith.constant 0 : index
    %c0_112 = arith.constant 0 : index
    %302 = vector.load %arg5[%c0_110, %c0_111, %c0_112] : memref<1x8x256xf32, #tpu.memory_space<vmem>>, vector<1x8x256xf32>
    %303 = vector.shape_cast %302 : vector<1x8x256xf32> to vector<8x256xf32>
    %304 = vector.shape_cast %301 : vector<8x256xf32> to vector<1x8x256xf32>
    tpu.vector_store %arg5[%c0_110, %c0_111, %c0_112], %304 {strides = array<i32>} : memref<1x8x256xf32, #tpu.memory_space<vmem>>, vector<1x8x256xf32>,
    return
  }
  func.func @transform_0(%arg0: i32) -> (i32, i32, i32) {
    %c0_i32 = arith.constant 0 : i32
    %c0_i32_0 = arith.constant 0 : i32
    %c0_i32_1 = arith.constant 0 : i32
    return %arg0, %c0_i32, %c0_i32_0 : i32, i32, i32
  }
  func.func @transform_1(%arg0: i32) -> (i32, i32, i32) {
    %c0_i32 = arith.constant 0 : i32
    %c0_i32_0 = arith.constant 0 : i32
    %c0_i32_1 = arith.constant 0 : i32
    %c0_i32_2 = arith.constant 0 : i32
    return %c0_i32, %c0_i32_0, %c0_i32_1 : i32, i32, i32
  }
  func.func @transform_2(%arg0: i32) -> (i32, i32, i32) {
    %c0_i32 = arith.constant 0 : i32
    %c0_i32_0 = arith.constant 0 : i32
    %c0_i32_1 = arith.constant 0 : i32
    %c0_i32_2 = arith.constant 0 : i32
    return %c0_i32, %c0_i32_0, %c0_i32_1 : i32, i32, i32
  }
  func.func @transform_3(%arg0: i32) -> (i32, i32) {
    %c0_i32 = arith.constant 0 : i32
    %c0_i32_0 = arith.constant 0 : i32
    %c0_i32_1 = arith.constant 0 : i32
    return %c0_i32, %c0_i32_0 : i32, i32
  }
  func.func @transform_4(%arg0: i32) -> (i32, i32, i32) {
    %c0_i32 = arith.constant 0 : i32
    %c0_i32_0 = arith.constant 0 : i32
    %c0_i32_1 = arith.constant 0 : i32
    return %arg0, %c0_i32, %c0_i32_0 : i32, i32, i32
  }
}

</mosaic_0001>

<llo_original>
// kernel: tpu_custom_call.1
$region0: #{tpu_custom_call.1}
  #allocation0 [shape = 'u32[]', space=smem, size = 0x4, offset = 0x4, fixed_abs, tag = 'smem constant byte address 0x4 - core index']
  #allocation1 [shape = 'u32[72,128]{1,0:T(1,128)}', space=vmem, size = 0x9000, scoped, tag = 'internal scratch']
  #allocation2 [shape = 'f32[40,256]{1,0:T(8,128)}', space=vmem, size = 0xa000, scoped, tag = 'scratch operand']
  %s0 = inlined_call_operand.vmem [shape: f32[2,4,256], index: 0, kind: input, shape index: {}]
  %s1 = inlined_call_operand.hbm [shape: f32[4,16,216], index: 1, kind: input, shape index: {}]
  %s2 = inlined_call_operand.vmem [shape: f32[4,16,4], index: 2, kind: input, shape index: {}]
  %s3 = inlined_call_operand.vmem [shape: f32[9,256], index: 3, kind: input, shape index: {}]
  %s4 = inlined_call_operand.hbm [shape: f32[2,8,256], index: 4, kind: output, shape index: {}]
  %s5 = sld [smem:[#allocation0]]
  $region53: #{tpu_custom_call.1} parent=0
    _
  %s7 = ssub.s32 1, %s5
  %s8 = scalar_select 0, %s7, %s5
  $region1: #{tpu_custom_call.1} parent=0
    #allocation3 [shape = 'u8[65536]{0}', space=vmem, size = 0x10000, scoped, tag = 'input window, operand 1, single buffered']
    #allocation4 [shape = 's32[2]{0}', space=sflag, size = 0x8, scoped, tag = 'scoped memory for tpu_custom_call.1']
    #allocation5 [shape = 's32[2]{0}', space=sflag, size = 0x8, scoped, tag = 'scoped memory for tpu_custom_call.1']
    #allocation6 [shape = 'u8[16384]{0}', space=vmem, size = 0x4000, scoped, tag = 'output window, operand 0']
    %9 = vsyncpa [#allocation4], 0
    %10 = vsyncpa [#allocation5], 0
    %s11 = scalar_lea.sflag [#allocation5], 1
    %12 = vsyncpa %s11, 0
    loop: start=0, step=1, limit=4
    $region2: #{tpu_custom_call.1} parent=1 // loop_pre_header
      _
    $region3: #{tpu_custom_call.1} parent=1 // loop_header
      %s14 = sphi 0, %s18
      %p15 = scmp.ge.s32.totalorder %s14, 4
      %s24 = sphi 0, %s26
      %s27 = sphi 0, %s24
      %s28 = sphi 0, %s27
      %s44 = sphi 0, %s28
      %s48 = sphi 0, %s48
      %s50 = sphi 0, %s48
      %s51 = sphi 0, %s50
      %s65 = sphi 0, %s51
      %s69 = sphi 0, %s69
      %s71 = sphi 0, %s69
      %s72 = sphi 0, %s71
      %s86 = sphi 0, %s72
      %s90 = sphi 0, %s90
      %s92 = sphi 0, %s90
      %s93 = sphi 0, %s92
      %s107 = sphi 0, %s93
      %s113 = sphi 0, %s115
      %s116 = sphi 0, %s113
      %s117 = sphi 0, %s116
      %s133 = sphi 0, %s117
    $region4: #{tpu_custom_call.1} parent=1 // loop_header_branch
      %17 = sbr.rel (%p15) target = $region8
    $region5: #{tpu_custom_call.1} parent=1 // loop_body
      %s19 = ssub.s32 %s14, 1
      %s20 = ssub.s32 %s14, 2
      %s21 = sadd.s32 %s14, 1
      %s22 = ssub.s32 %s14, %s21
      %p23 = scmp.eq.s32.totalorder %s22, 0
      %s25 = sadd.s32 %s24, 1
      %s26 = scalar_select %p23, %s24, %s25
      %p29 = pneg %p23
      %p30 = scmp.eq.s32.totalorder %s14, 1
      %p31 = por %p29, %p30
      %p32 = scmp.ne.s32.totalorder %s24, %s27
      %p33 = scmp.eq.s32.totalorder %s14, 0
      %p34 = por %p32, %p33
      %p35 = scmp.ne.s32.totalorder %s24, %s27
      %p36 = scmp.eq.s32.totalorder %s19, 1
      %p37 = por %p35, %p36
      %p38 = scmp.ne.s32.totalorder %s27, %s28
      %p39 = scmp.eq.s32.totalorder %s19, 0
      %p40 = por %p38, %p39
      %p41 = scmp.ne.s32.totalorder %s27, %s28
      %p42 = scmp.eq.s32.totalorder %s20, 1
      %p43 = por %p41, %p42
      %p45 = scmp.ne.s32.totalorder %s28, %s44
      %p46 = scmp.eq.s32.totalorder %s20, 0
      %p47 = por %p45, %p46
      %s49 = sadd.s32 %s48, 1
      %p52 = scmp.eq.s32.totalorder %s14, 1
      %p53 = scmp.ne.s32.totalorder %s48, %s50
      %p54 = scmp.eq.s32.totalorder %s14, 0
      %p55 = por %p53, %p54
      %p56 = scmp.ne.s32.totalorder %s48, %s50
      %p57 = scmp.eq.s32.totalorder %s19, 1
      %p58 = por %p56, %p57
      %p59 = scmp.ne.s32.totalorder %s50, %s51
      %p60 = scmp.eq.s32.totalorder %s19, 0
      %p61 = por %p59, %p60
      %p62 = scmp.ne.s32.totalorder %s50, %s51
      %p63 = scmp.eq.s32.totalorder %s20, 1
      %p64 = por %p62, %p63
      %p66 = scmp.ne.s32.totalorder %s51, %s65
      %p67 = scmp.eq.s32.totalorder %s20, 0
      %p68 = por %p66, %p67
      %s70 = sadd.s32 %s69, 1
      %p73 = scmp.eq.s32.totalorder %s14, 1
      %p74 = scmp.ne.s32.totalorder %s69, %s71
      %p75 = scmp.eq.s32.totalorder %s14, 0
      %p76 = por %p74, %p75
      %p77 = scmp.ne.s32.totalorder %s69, %s71
      %p78 = scmp.eq.s32.totalorder %s19, 1
      %p79 = por %p77, %p78
      %p80 = scmp.ne.s32.totalorder %s71, %s72
      %p81 = scmp.eq.s32.totalorder %s19, 0
      %p82 = por %p80, %p81
      %p83 = scmp.ne.s32.totalorder %s71, %s72
      %p84 = scmp.eq.s32.totalorder %s20, 1
      %p85 = por %p83, %p84
      %p87 = scmp.ne.s32.totalorder %s72, %s86
      %p88 = scmp.eq.s32.totalorder %s20, 0
      %p89 = por %p87, %p88
      %s91 = sadd.s32 %s90, 1
      %p94 = scmp.eq.s32.totalorder %s14, 1
      %p95 = scmp.ne.s32.totalorder %s90, %s92
      %p96 = scmp.eq.s32.totalorder %s14, 0
      %p97 = por %p95, %p96
      %p98 = scmp.ne.s32.totalorder %s90, %s92
      %p99 = scmp.eq.s32.totalorder %s19, 1
      %p100 = por %p98, %p99
      %p101 = scmp.ne.s32.totalorder %s92, %s93
      %p102 = scmp.eq.s32.totalorder %s19, 0
      %p103 = por %p101, %p102
      %p104 = scmp.ne.s32.totalorder %s92, %s93
      %p105 = scmp.eq.s32.totalorder %s20, 1
      %p106 = por %p104, %p105
      %p108 = scmp.ne.s32.totalorder %s93, %s107
      %p109 = scmp.eq.s32.totalorder %s20, 0
      %p110 = por %p108, %p109
      %s111 = ssub.s32 %s14, %s21
      %p112 = scmp.eq.s32.totalorder %s111, 0
      %s114 = sadd.s32 %s113, 1
      %s115 = scalar_select %p112, %s113, %s114
      %p118 = pneg %p112
      %p119 = scmp.eq.s32.totalorder %s14, 1
      %p120 = por %p118, %p119
      %p121 = scmp.ne.s32.totalorder %s113, %s116
      %p122 = scmp.eq.s32.totalorder %s14, 0
      %p123 = por %p121, %p122
      %p124 = scmp.ne.s32.totalorder %s113, %s116
      %p125 = scmp.eq.s32.totalorder %s19, 1
      %p126 = por %p124, %p125
      %p127 = scmp.ne.s32.totalorder %s116, %s117
      %p128 = scmp.eq.s32.totalorder %s19, 0
      %p129 = por %p127, %p128
      %p130 = scmp.ne.s32.totalorder %s116, %s117
      %p131 = scmp.eq.s32.totalorder %s20, 1
      %p132 = por %p130, %p131
      %p134 = scmp.ne.s32.totalorder %s117, %s133
      %p135 = scmp.eq.s32.totalorder %s20, 0
      %p136 = por %p134, %p135
      %p137 = scmp.le.s32.totalorder 1, %s14
      %p138 = scmp.lt.s32.totalorder %s14, 3
      %p139 = pnand %p137, %p138
      %p140 = pneg %p139
      // Predicated region
      $region9: #{tpu_custom_call.1} parent=5 // pred_check
        _
      $region10: #{tpu_custom_call.1} parent=5 // pred_check_branch
        %142 = sbr.rel (%p139) target = $region12
      $region11: #{tpu_custom_call.1} parent=5 // pred_region
        %s143 = ssub.s32 %s14, 1
        // Predicated region
        $region13: #{tpu_custom_call.1} parent=11 // pred_check
          %p144 = pneg %p61
        $region14: #{tpu_custom_call.1} parent=11 // pred_check_branch
          %146 = sbr.rel (%p144) target = $region16
        $region15: #{tpu_custom_call.1} parent=11 // pred_region
          %148 = vsyncadd [#allocation4], 0
          %s149 = sshll.u32 %s1, 4
          %s150 = int_to_ptr.hbm [resolvable:$true] %s149
          %s151 = sshll.u32 [#allocation3], 4
          %s152 = int_to_ptr.vmem [resolvable:$true] %s151
          %157 = dma.hbm_to_vmem [thread:$0]  %s150, 2048, %s152, [#allocation4], 256, 256, 16
        $region16: #{tpu_custom_call.1} parent=11 // pred_fallthru
          _
        // Predicated region
        $region17: #{tpu_custom_call.1} parent=11 // pred_check
          %p158 = pneg %p82
        $region18: #{tpu_custom_call.1} parent=11 // pred_check_branch
          %160 = sbr.rel (%p158) target = $region20
        $region19: #{tpu_custom_call.1} parent=11 // pred_region
          _
        $region20: #{tpu_custom_call.1} parent=11 // pred_fallthru
          _
        // Predicated region
        $region21: #{tpu_custom_call.1} parent=11 // pred_check
          %p161 = pneg %p103
        $region22: #{tpu_custom_call.1} parent=11 // pred_check_branch
          %163 = sbr.rel (%p161) target = $region24
        $region23: #{tpu_custom_call.1} parent=11 // pred_region
          _
        $region24: #{tpu_custom_call.1} parent=11 // pred_fallthru
          _
      $region12: #{tpu_custom_call.1} parent=5 // pred_fallthru
        _
      %p164 = scmp.lt.s32.totalorder %s14, 2
      // Predicated region
      $region25: #{tpu_custom_call.1} parent=5 // pred_check
        %p165 = pneg %p164
      $region26: #{tpu_custom_call.1} parent=5 // pred_check_branch
        %167 = sbr.rel (%p165) target = $region28
      $region27: #{tpu_custom_call.1} parent=5 // pred_region
        // Predicated region
        $region29: #{tpu_custom_call.1} parent=27 // pred_check
          %p168 = pneg %p34
        $region30: #{tpu_custom_call.1} parent=27 // pred_check_branch
          %170 = sbr.rel (%p168) target = $region32
        $region31: #{tpu_custom_call.1} parent=27 // pred_region
          %p171 = scmp.lt.s32.totalorder %s14, 1
          %s172 = scalar_select %p171, %s14, 1
          %s173 = smul.addr %s172, 2
          %s174 = smul.addr %s173, 4
          %s175 = scalar_lea.vmem %s0, %s174
        $region32: #{tpu_custom_call.1} parent=27 // pred_fallthru
          _
      $region28: #{tpu_custom_call.1} parent=5 // pred_fallthru
        _
      %p176 = scmp.le.s32.totalorder 1, %s14
      %p177 = scmp.lt.s32.totalorder %s14, 3
      %p178 = pnand %p176, %p177
      %p179 = pneg %p178
      // Predicated region
      $region33: #{tpu_custom_call.1} parent=5 // pred_check
        _
      $region34: #{tpu_custom_call.1} parent=5 // pred_check_branch
        %181 = sbr.rel (%p178) target = $region36
      $region35: #{tpu_custom_call.1} parent=5 // pred_region
        %s182 = ssub.s32 %s14, 1
        // Predicated region
        $region37: #{tpu_custom_call.1} parent=35 // pred_check
          %p183 = pneg %p61
        $region38: #{tpu_custom_call.1} parent=35 // pred_check_branch
          %185 = sbr.rel (%p183) target = $region40
        $region39: #{tpu_custom_call.1} parent=35 // pred_region
          %187 = dma.done [#allocation4], 2048
        $region40: #{tpu_custom_call.1} parent=35 // pred_fallthru
          _
        %p188 = scmp.lt.s32.totalorder %s19, 1
        %s189 = scalar_select %p188, %s19, 1
        %s190 = smul.addr %s189, 2
        %s191 = smul.addr %s190, 4
        %s192 = scalar_lea.vmem %s0, %s191
        %p193 = pneg %p40
        %p194 = pneg %p37
        %p195 = pneg %p61
        %p196 = pneg %p58
        %p197 = pneg %p82
        %p198 = pneg %p79
        %p199 = pneg %p103
        %p200 = pneg %p100
        %p201 = pneg %p129
        %p202 = pneg %p126
        %s203 = sand.u32 %s116, 1
        %s204 = scalar_lea.sflag [#allocation5], %s203
        %s205 = sand.u32 %s116, 1
        %s206 = smul.addr %s205, 16
        %s207 = scalar_lea.vmem [#allocation6], %s206
        %p208 = scmp.lt.s32.totalorder %s19, 1
        %s209 = scalar_select %p208, %s19, 1
        %s210 = smul.addr %s209, 2
        %s211 = smul.addr %s210, 4
        %s212 = scalar_lea.vmem %s0, %s211
        %v213 = vld [vmem:[%s212] sm:$0xff]
        %215 = vst [vmem:[#allocation1] ss:$2 sm:$0xff] %v213
        %v216 = vld.sshfl [vmem:[#allocation1] sm:$0xff pattern:$0x75316420]
        %v217 = vld.sshfl [vmem:[#allocation1 + $0x8] sm:$0xff pattern:$0x75316420]
        %vm220 = vcmask 1043456
        %v221 = vsel %vm220, %v216, 0.0
        %v222 = vsel %vm220, %v217, 0.0
        %223 = vst [vmem:[#allocation2] sm:$0xff] %v221
        %224 = vst [vmem:[#allocation2 + $0x8] sm:$0xff] %v222
        %v225 = vld [vmem:[#allocation2] sm:$0xff]
        %v226 = vld [vmem:[#allocation2 + $0x8] sm:$0xff]
        %228 = vrot.lane.b32.xlu0 %v226, 17
        %v229 = vpop.permute.xlu0 %228
        %232 = vrot.lane.b32.xlu0 %v225, 17
        %v233 = vpop.permute.xlu0 %232
        %vm234 = vcmask 138240
        %v235 = vsel %vm234, %v233, %v229
        %v238 = vsel %vm234, %v229, %v233
        %v239 = vld [vmem:[%s3] ss:$8 sm:$0x3]
        %v241 = vperm.slane %v239, 0
        %v242 = vperm.slane %v239, 1
        %v245 = vmul.f32 %v238, %v241
        %v246 = vmul.f32 %v235, %v242
        %247 = vrot.lane.b32.xlu0 %v226, 16
        %v248 = vpop.permute.xlu0 %247
        %250 = vrot.lane.b32.xlu0 %v225, 16
        %v251 = vpop.permute.xlu0 %250
        %vm252 = vcmask 130048
        %v253 = vsel %vm252, %v251, %v248
        %v256 = vsel %vm252, %v248, %v251
        %s257 = scalar_lea.vmem %s3, 1
        %v258 = vld [vmem:[%s257] ss:$8 sm:$0x3]
        %v260 = vperm.slane %v258, 0
        %v261 = vperm.slane %v258, 1
        %v264 = vmul.f32 %v256, %v260
        %v265 = vmul.f32 %v253, %v261
        %266 = vrot.lane.b32.xlu0 %v226, 15
        %v267 = vpop.permute.xlu0 %266
        %269 = vrot.lane.b32.xlu0 %v225, 15
        %v270 = vpop.permute.xlu0 %269
        %vm271 = vcmask 121856
        %v272 = vsel %vm271, %v270, %v267
        %v275 = vsel %vm271, %v267, %v270
        %s276 = scalar_lea.vmem %s3, 2
        %v277 = vld [vmem:[%s276] ss:$8 sm:$0x3]
        %v279 = vperm.slane %v277, 0
        %v280 = vperm.slane %v277, 1
        %v283 = vmul.f32 %v275, %v279
        %v284 = vmul.f32 %v272, %v280
        %285 = vrot.lane.b32.xlu0 %v226, 1
        %v286 = vpop.permute.xlu0 %285
        %288 = vrot.lane.b32.xlu0 %v225, 1
        %v289 = vpop.permute.xlu0 %288
        %vm290 = vcmask 7168
        %v291 = vsel %vm290, %v289, %v286
        %v294 = vsel %vm290, %v286, %v289
        %s295 = scalar_lea.vmem %s3, 3
        %v296 = vld [vmem:[%s295] ss:$8 sm:$0x3]
        %v298 = vperm.slane %v296, 0
        %v299 = vperm.slane %v296, 1
        %v302 = vmul.f32 %v294, %v298
        %v303 = vmul.f32 %v291, %v299
        %304 = vrot.lane.b32.xlu0 %v225, 127
        %v305 = vpop.permute.xlu0 %304
        %306 = vrot.lane.b32.xlu0 %v226, 127
        %v307 = vpop.permute.xlu0 %306
        %vm308 = vcmask 1039360
        %v309 = vsel %vm308, %v305, %v307
        %v313 = vsel %vm308, %v307, %v305
        %s314 = scalar_lea.vmem %s3, 5
        %v315 = vld [vmem:[%s314] ss:$8 sm:$0x3]
        %v317 = vperm.slane %v315, 0
        %v318 = vperm.slane %v315, 1
        %v321 = vmul.f32 %v309, %v317
        %v322 = vmul.f32 %v313, %v318
        %323 = vrot.lane.b32.xlu0 %v225, 113
        %v324 = vpop.permute.xlu0 %323
        %325 = vrot.lane.b32.xlu0 %v226, 113
        %v326 = vpop.permute.xlu0 %325
        %vm327 = vcmask 924672
        %v328 = vsel %vm327, %v324, %v326
        %v332 = vsel %vm327, %v326, %v324
        %s333 = scalar_lea.vmem %s3, 6
        %v334 = vld [vmem:[%s333] ss:$8 sm:$0x3]
        %v336 = vperm.slane %v334, 0
        %v337 = vperm.slane %v334, 1
        %v340 = vmul.f32 %v328, %v336
        %v341 = vmul.f32 %v332, %v337
        %342 = vrot.lane.b32.xlu0 %v225, 112
        %v343 = vpop.permute.xlu0 %342
        %344 = vrot.lane.b32.xlu0 %v226, 112
        %v345 = vpop.permute.xlu0 %344
        %vm346 = vcmask 916480
        %v347 = vsel %vm346, %v343, %v345
        %v351 = vsel %vm346, %v345, %v343
        %s352 = scalar_lea.vmem %s3, 7
        %v353 = vld [vmem:[%s352] ss:$8 sm:$0x3]
        %v355 = vperm.slane %v353, 0
        %v356 = vperm.slane %v353, 1
        %v359 = vmul.f32 %v347, %v355
        %v360 = vmul.f32 %v351, %v356
        %361 = vrot.lane.b32.xlu0 %v225, 111
        %v362 = vpop.permute.xlu0 %361
        %363 = vrot.lane.b32.xlu0 %v226, 111
        %v364 = vpop.permute.xlu0 %363
        %vm365 = vcmask 908288
        %v366 = vsel %vm365, %v362, %v364
        %v370 = vsel %vm365, %v364, %v362
        %s371 = scalar_lea.vmem %s3, 16
        %v372 = vld [vmem:[%s371] ss:$8 sm:$0x3]
        %v374 = vperm.slane %v372, 0
        %v375 = vperm.slane %v372, 1
        %v378 = vmul.f32 %v366, %v374
        %v379 = vmul.f32 %v370, %v375
        %v380 = vld [vmem:[#allocation3] sm:$0xff]
        %v381 = vld [vmem:[#allocation3 + $0x10] sm:$0xff]
        %v382 = vld [vmem:[%s2] sm:$0xff]
        %v383 = vld [vmem:[%s2 + $0x8] sm:$0xff]
        %385 = vset.pattern.permute.xlu0 0
        %386 = vperm.xlu0 %385, %v382
        %v387 = vpop.permute.xlu0 %386
        %390 = vset.pattern.permute.xlu0 0
        %391 = vperm.xlu0 %390, %v383
        %v392 = vpop.permute.xlu0 %391
        %vm394 = vcmask 588800
        %v396 = vsel %vm394, %v380, 0
        %v399 = vsel %vm394, %v381, 0
        %401 = vmatpush.msra.mxu0 0.0
        %402 = vmatpush.msra.mxu0 0.0
        %403 = vmatpush.msra.mxu0 0.0
        %404 = vmatpush.msra.mxu0 0.0
        %405 = vmatpush.msra.mxu0 0.0
        %406 = vmatpush.msra.mxu0 0.0
        %407 = vmatpush.msra.mxu0 0.0
        %408 = vmatpush.msra.mxu0 %v378
        %409 = vmatpush.msra.mxu0 %v359
        %410 = vmatpush.msra.mxu0 %v340
        %411 = vmatpush.msra.mxu0 %v321
        %412 = vmatpush.msra.mxu0 %v225
        %413 = vmatpush.msra.mxu0 %v302
        %414 = vmatpush.msra.mxu0 %v283
        %415 = vmatpush.msra.mxu0 %v264
        %416 = vmatpush.msra.mxu0 %v245
        %417 = vmatmul.f32.gmra.mxu0 %v396
        %v418 = vpop.f32.mrf.mxu0
        %v419 = vadd.f32 %v387, %v418
        %420 = vmatmul.f32.gmra.mxu0 %v399
        %v421 = vpop.f32.mrf.mxu0
        %v422 = vadd.f32 %v392, %v421
        %423 = vdwg.mxu0
        %424 = vmatpush.msra.mxu0 0.0
        %425 = vmatpush.msra.mxu0 0.0
        %426 = vmatpush.msra.mxu0 0.0
        %427 = vmatpush.msra.mxu0 0.0
        %428 = vmatpush.msra.mxu0 0.0
        %429 = vmatpush.msra.mxu0 0.0
        %430 = vmatpush.msra.mxu0 0.0
        %431 = vmatpush.msra.mxu0 %v379
        %432 = vmatpush.msra.mxu0 %v360
        %433 = vmatpush.msra.mxu0 %v341
        %434 = vmatpush.msra.mxu0 %v322
        %435 = vmatpush.msra.mxu0 %v226
        %436 = vmatpush.msra.mxu0 %v303
        %437 = vmatpush.msra.mxu0 %v284
        %438 = vmatpush.msra.mxu0 %v265
        %439 = vmatpush.msra.mxu0 %v246
        %440 = vmatmul.f32.gmra.mxu0 %v396
        %v441 = vpop.f32.mrf.mxu0
        %v442 = vadd.f32 %v387, %v441
        %443 = vmatmul.f32.gmra.mxu0 %v399
        %v444 = vpop.f32.mrf.mxu0
        %v445 = vadd.f32 %v392, %v444
        %446 = vdwg.mxu0
        %v447 = vadd.f32 %v419, %v442
        %448 = vadd.xlane.f32.xlu0 %v447
        %v449 = vpop.xlane.xlu0 %448
        %v450 = vadd.f32 %v422, %v445
        %451 = vadd.xlane.f32.xlu0 %v450
        %v452 = vpop.xlane.xlu0 %451
        %v453 = vrcp.pop 256.0
        %v454 = vmul.f32 256.0, %v453
        %v455 = vsub.f32 1.0, %v454
        %v456 = vmul.f32 %v453, %v455
        %v457 = vadd.f32 %v453, %v456
        %vm458 = vweird.f32 %v453
        %v459 = vsel %vm458, %v453, %v457
        %v460 = vmul.f32 %v449, %v459
        %v461 = vmul.f32 %v452, %v459
        %v462 = vsub.f32 %v419, %v460
        %v463 = vsub.f32 %v442, %v460
        %v464 = vsub.f32 %v422, %v461
        %v465 = vsub.f32 %v445, %v461
        %v466 = vmul.f32 %v462, %v462
        %v467 = vmul.f32 %v463, %v463
        %v468 = vmul.f32 %v464, %v464
        %v469 = vmul.f32 %v465, %v465
        %v470 = vadd.f32 %v466, %v467
        %471 = vadd.xlane.f32.xlu0 %v470
        %v472 = vpop.xlane.xlu0 %471
        %v473 = vadd.f32 %v468, %v469
        %474 = vadd.xlane.f32.xlu0 %v473
        %v475 = vpop.xlane.xlu0 %474
        %v476 = vmul.f32 %v472, %v459
        %v477 = vmul.f32 %v475, %v459
        %v478 = vadd.f32 %v476, 1e-05
        %v479 = vadd.f32 %v477, 1e-05
        %v480 = vrsqrt.pop %v478
        %v481 = vmul.f32 %v480, %v478
        %v482 = vmul.f32 %v481, %v480
        %v483 = vmul.f32 0.5, %v482
        %v484 = vsub.f32 1.5, %v483
        %v485 = vmul.f32 %v480, %v484
        %vm486 = vweird.f32 %v478
        %vm487 = vweird.f32 %v480
        %vm488 = vmor %vm486, %vm487
        %v489 = vsel %vm488, %v480, %v485
        %v490 = vrsqrt.pop %v479
        %v491 = vmul.f32 %v490, %v479
        %v492 = vmul.f32 %v491, %v490
        %v493 = vmul.f32 0.5, %v492
        %v494 = vsub.f32 1.5, %v493
        %v495 = vmul.f32 %v490, %v494
        %vm496 = vweird.f32 %v479
        %vm497 = vweird.f32 %v490
        %vm498 = vmor %vm496, %vm497
        %v499 = vsel %vm498, %v490, %v495
        %v500 = vmul.f32 %v462, %v489
        %v501 = vmul.f32 %v463, %v489
        %v502 = vmul.f32 %v464, %v499
        %v503 = vmul.f32 %v465, %v499
        %504 = vset.pattern.permute.xlu0 1
        %505 = vperm.xlu0 %504, %v382
        %v506 = vpop.permute.xlu0 %505
        %508 = vset.pattern.permute.xlu0 1
        %509 = vperm.xlu0 %508, %v383
        %v510 = vpop.permute.xlu0 %509
        %v512 = vmul.f32 %v500, %v506
        %v513 = vmul.f32 %v501, %v506
        %v514 = vmul.f32 %v502, %v510
        %v515 = vmul.f32 %v503, %v510
        %516 = vset.pattern.permute.xlu0 2
        %517 = vperm.xlu0 %516, %v382
        %v518 = vpop.permute.xlu0 %517
        %520 = vset.pattern.permute.xlu0 2
        %521 = vperm.xlu0 %520, %v383
        %v522 = vpop.permute.xlu0 %521
        %v524 = vadd.f32 %v512, %v518
        %v525 = vadd.f32 %v513, %v518
        %v526 = vadd.f32 %v514, %v522
        %v527 = vadd.f32 %v515, %v522
        %vm528 = vcmp.gt.f32.partialorder %v524, 0.0
        %vm529 = vcmp.gt.f32.partialorder %v525, 0.0
        %vm530 = vcmp.gt.f32.partialorder %v526, 0.0
        %vm531 = vcmp.gt.f32.partialorder %v527, 0.0
        %v532 = vmul.f32 %v524, 0.01
        %v533 = vmul.f32 %v525, 0.01
        %v534 = vmul.f32 %v526, 0.01
        %v535 = vmul.f32 %v527, 0.01
        %v536 = vsel %vm528, %v524, %v532
        %v537 = vsel %vm529, %v525, %v533
        %v538 = vsel %vm530, %v526, %v534
        %v539 = vsel %vm531, %v527, %v535
        %540 = vst [vmem:[#allocation2 + $0x10] sm:$0xff] %v536
        %541 = vst [vmem:[#allocation2 + $0x18] sm:$0xff] %v537
        %542 = vst [vmem:[#allocation2 + $0x20] sm:$0xff] %v538
        %543 = vst [vmem:[#allocation2 + $0x28] sm:$0xff] %v539
        %v544 = vld [vmem:[#allocation2] sm:$0xff]
        %v545 = vld [vmem:[#allocation2 + $0x8] sm:$0xff]
        %v546 = vld [vmem:[#allocation2 + $0x10] sm:$0xff]
        %v547 = vld [vmem:[#allocation2 + $0x18] sm:$0xff]
        %v548 = vld [vmem:[#allocation2 + $0x20] sm:$0xff]
        %v549 = vld [vmem:[#allocation2 + $0x28] sm:$0xff]
        %553 = vrot.lane.b32.xlu0 %v545, 17
        %v554 = vpop.permute.xlu0 %553
        %555 = vrot.lane.b32.xlu0 %v547, 17
        %v556 = vpop.permute.xlu0 %555
        %557 = vrot.lane.b32.xlu0 %v549, 17
        %v558 = vpop.permute.xlu0 %557
        %565 = vrot.lane.b32.xlu0 %v544, 17
        %v566 = vpop.permute.xlu0 %565
        %567 = vrot.lane.b32.xlu0 %v546, 17
        %v568 = vpop.permute.xlu0 %567
        %569 = vrot.lane.b32.xlu0 %v548, 17
        %v570 = vpop.permute.xlu0 %569
        %v571 = vsel %vm234, %v566, %v554
        %v572 = vsel %vm234, %v568, %v556
        %v573 = vsel %vm234, %v570, %v558
        %v580 = vsel %vm234, %v554, %v566
        %v581 = vsel %vm234, %v556, %v568
        %v582 = vsel %vm234, %v558, %v570
        %v583 = vld [vmem:[%s3] ss:$8 sm:$0x3]
        %v585 = vperm.slane %v583, 0
        %v586 = vperm.slane %v583, 1
        %v589 = vmul.f32 %v580, %v585
        %v590 = vmul.f32 %v571, %v586
        %v591 = vmul.f32 %v581, %v585
        %v592 = vmul.f32 %v572, %v586
        %v593 = vmul.f32 %v582, %v585
        %v594 = vmul.f32 %v573, %v586
        %595 = vrot.lane.b32.xlu0 %v545, 16
        %v596 = vpop.permute.xlu0 %595
        %597 = vrot.lane.b32.xlu0 %v547, 16
        %v598 = vpop.permute.xlu0 %597
        %599 = vrot.lane.b32.xlu0 %v549, 16
        %v600 = vpop.permute.xlu0 %599
        %604 = vrot.lane.b32.xlu0 %v544, 16
        %v605 = vpop.permute.xlu0 %604
        %606 = vrot.lane.b32.xlu0 %v546, 16
        %v607 = vpop.permute.xlu0 %606
        %608 = vrot.lane.b32.xlu0 %v548, 16
        %v609 = vpop.permute.xlu0 %608
        %v610 = vsel %vm252, %v605, %v596
        %v611 = vsel %vm252, %v607, %v598
        %v612 = vsel %vm252, %v609, %v600
        %v619 = vsel %vm252, %v596, %v605
        %v620 = vsel %vm252, %v598, %v607
        %v621 = vsel %vm252, %v600, %v609
        %v622 = vld [vmem:[%s257] ss:$8 sm:$0x3]
        %v624 = vperm.slane %v622, 0
        %v625 = vperm.slane %v622, 1
        %v628 = vmul.f32 %v619, %v624
        %v629 = vmul.f32 %v610, %v625
        %v630 = vmul.f32 %v620, %v624
        %v631 = vmul.f32 %v611, %v625
        %v632 = vmul.f32 %v621, %v624
        %v633 = vmul.f32 %v612, %v625
        %634 = vrot.lane.b32.xlu0 %v545, 15
        %v635 = vpop.permute.xlu0 %634
        %636 = vrot.lane.b32.xlu0 %v547, 15
        %v637 = vpop.permute.xlu0 %636
        %638 = vrot.lane.b32.xlu0 %v549, 15
        %v639 = vpop.permute.xlu0 %638
        %643 = vrot.lane.b32.xlu0 %v544, 15
        %v644 = vpop.permute.xlu0 %643
        %645 = vrot.lane.b32.xlu0 %v546, 15
        %v646 = vpop.permute.xlu0 %645
        %647 = vrot.lane.b32.xlu0 %v548, 15
        %v648 = vpop.permute.xlu0 %647
        %v649 = vsel %vm271, %v644, %v635
        %v650 = vsel %vm271, %v646, %v637
        %v651 = vsel %vm271, %v648, %v639
        %v658 = vsel %vm271, %v635, %v644
        %v659 = vsel %vm271, %v637, %v646
        %v660 = vsel %vm271, %v639, %v648
        %v661 = vld [vmem:[%s276] ss:$8 sm:$0x3]
        %v663 = vperm.slane %v661, 0
        %v664 = vperm.slane %v661, 1
        %v667 = vmul.f32 %v658, %v663
        %v668 = vmul.f32 %v649, %v664
        %v669 = vmul.f32 %v659, %v663
        %v670 = vmul.f32 %v650, %v664
        %v671 = vmul.f32 %v660, %v663
        %v672 = vmul.f32 %v651, %v664
        %673 = vrot.lane.b32.xlu0 %v545, 1
        %v674 = vpop.permute.xlu0 %673
        %675 = vrot.lane.b32.xlu0 %v547, 1
        %v676 = vpop.permute.xlu0 %675
        %677 = vrot.lane.b32.xlu0 %v549, 1
        %v678 = vpop.permute.xlu0 %677
        %682 = vrot.lane.b32.xlu0 %v544, 1
        %v683 = vpop.permute.xlu0 %682
        %684 = vrot.lane.b32.xlu0 %v546, 1
        %v685 = vpop.permute.xlu0 %684
        %686 = vrot.lane.b32.xlu0 %v548, 1
        %v687 = vpop.permute.xlu0 %686
        %v688 = vsel %vm290, %v683, %v674
        %v689 = vsel %vm290, %v685, %v676
        %v690 = vsel %vm290, %v687, %v678
        %v697 = vsel %vm290, %v674, %v683
        %v698 = vsel %vm290, %v676, %v685
        %v699 = vsel %vm290, %v678, %v687
        %v700 = vld [vmem:[%s295] ss:$8 sm:$0x3]
        %v702 = vperm.slane %v700, 0
        %v703 = vperm.slane %v700, 1
        %v706 = vmul.f32 %v697, %v702
        %v707 = vmul.f32 %v688, %v703
        %v708 = vmul.f32 %v698, %v702
        %v709 = vmul.f32 %v689, %v703
        %v710 = vmul.f32 %v699, %v702
        %v711 = vmul.f32 %v690, %v703
        %712 = vrot.lane.b32.xlu0 %v544, 127
        %v713 = vpop.permute.xlu0 %712
        %714 = vrot.lane.b32.xlu0 %v545, 127
        %v715 = vpop.permute.xlu0 %714
        %716 = vrot.lane.b32.xlu0 %v546, 127
        %v717 = vpop.permute.xlu0 %716
        %718 = vrot.lane.b32.xlu0 %v547, 127
        %v719 = vpop.permute.xlu0 %718
        %720 = vrot.lane.b32.xlu0 %v548, 127
        %v721 = vpop.permute.xlu0 %720
        %722 = vrot.lane.b32.xlu0 %v549, 127
        %v723 = vpop.permute.xlu0 %722
        %v724 = vsel %vm308, %v713, %v715
        %v725 = vsel %vm308, %v717, %v719
        %v726 = vsel %vm308, %v721, %v723
        %v736 = vsel %vm308, %v715, %v713
        %v737 = vsel %vm308, %v719, %v717
        %v738 = vsel %vm308, %v723, %v721
        %v739 = vld [vmem:[%s314] ss:$8 sm:$0x3]
        %v741 = vperm.slane %v739, 0
        %v742 = vperm.slane %v739, 1
        %v745 = vmul.f32 %v724, %v741
        %v746 = vmul.f32 %v736, %v742
        %v747 = vmul.f32 %v725, %v741
        %v748 = vmul.f32 %v737, %v742
        %v749 = vmul.f32 %v726, %v741
        %v750 = vmul.f32 %v738, %v742
        %751 = vrot.lane.b32.xlu0 %v544, 113
        %v752 = vpop.permute.xlu0 %751
        %753 = vrot.lane.b32.xlu0 %v545, 113
        %v754 = vpop.permute.xlu0 %753
        %755 = vrot.lane.b32.xlu0 %v546, 113
        %v756 = vpop.permute.xlu0 %755
        %757 = vrot.lane.b32.xlu0 %v547, 113
        %v758 = vpop.permute.xlu0 %757
        %759 = vrot.lane.b32.xlu0 %v548, 113
        %v760 = vpop.permute.xlu0 %759
        %761 = vrot.lane.b32.xlu0 %v549, 113
        %v762 = vpop.permute.xlu0 %761
        %v763 = vsel %vm327, %v752, %v754
        %v764 = vsel %vm327, %v756, %v758
        %v765 = vsel %vm327, %v760, %v762
        %v775 = vsel %vm327, %v754, %v752
        %v776 = vsel %vm327, %v758, %v756
        %v777 = vsel %vm327, %v762, %v760
        %v778 = vld [vmem:[%s333] ss:$8 sm:$0x3]
        %v780 = vperm.slane %v778, 0
        %v781 = vperm.slane %v778, 1
        %v784 = vmul.f32 %v763, %v780
        %v785 = vmul.f32 %v775, %v781
        %v786 = vmul.f32 %v764, %v780
        %v787 = vmul.f32 %v776, %v781
        %v788 = vmul.f32 %v765, %v780
        %v789 = vmul.f32 %v777, %v781
        %790 = vrot.lane.b32.xlu0 %v544, 112
        %v791 = vpop.permute.xlu0 %790
        %792 = vrot.lane.b32.xlu0 %v545, 112
        %v793 = vpop.permute.xlu0 %792
        %794 = vrot.lane.b32.xlu0 %v546, 112
        %v795 = vpop.permute.xlu0 %794
        %796 = vrot.lane.b32.xlu0 %v547, 112
        %v797 = vpop.permute.xlu0 %796
        %798 = vrot.lane.b32.xlu0 %v548, 112
        %v799 = vpop.permute.xlu0 %798
        %800 = vrot.lane.b32.xlu0 %v549, 112
        %v801 = vpop.permute.xlu0 %800
        %v802 = vsel %vm346, %v791, %v793
        %v803 = vsel %vm346, %v795, %v797
        %v804 = vsel %vm346, %v799, %v801
        %v814 = vsel %vm346, %v793, %v791
        %v815 = vsel %vm346, %v797, %v795
        %v816 = vsel %vm346, %v801, %v799
        %v817 = vld [vmem:[%s352] ss:$8 sm:$0x3]
        %v819 = vperm.slane %v817, 0
        %v820 = vperm.slane %v817, 1
        %v823 = vmul.f32 %v802, %v819
        %v824 = vmul.f32 %v814, %v820
        %v825 = vmul.f32 %v803, %v819
        %v826 = vmul.f32 %v815, %v820
        %v827 = vmul.f32 %v804, %v819
        %v828 = vmul.f32 %v816, %v820
        %829 = vrot.lane.b32.xlu0 %v544, 111
        %v830 = vpop.permute.xlu0 %829
        %831 = vrot.lane.b32.xlu0 %v545, 111
        %v832 = vpop.permute.xlu0 %831
        %833 = vrot.lane.b32.xlu0 %v546, 111
        %v834 = vpop.permute.xlu0 %833
        %835 = vrot.lane.b32.xlu0 %v547, 111
        %v836 = vpop.permute.xlu0 %835
        %837 = vrot.lane.b32.xlu0 %v548, 111
        %v838 = vpop.permute.xlu0 %837
        %839 = vrot.lane.b32.xlu0 %v549, 111
        %v840 = vpop.permute.xlu0 %839
        %v841 = vsel %vm365, %v830, %v832
        %v842 = vsel %vm365, %v834, %v836
        %v843 = vsel %vm365, %v838, %v840
        %v853 = vsel %vm365, %v832, %v830
        %v854 = vsel %vm365, %v836, %v834
        %v855 = vsel %vm365, %v840, %v838
        %v856 = vld [vmem:[%s371] ss:$8 sm:$0x3]
        %v858 = vperm.slane %v856, 0
        %v859 = vperm.slane %v856, 1
        %v862 = vmul.f32 %v841, %v858
        %v863 = vmul.f32 %v853, %v859
        %v864 = vmul.f32 %v842, %v858
        %v865 = vmul.f32 %v854, %v859
        %v866 = vmul.f32 %v843, %v858
        %v867 = vmul.f32 %v855, %v859
        %s868 = scalar_lea.vmem [#allocation3], 32
        %v869 = vld [vmem:[%s868] sm:$0xff]
        %v870 = vld [vmem:[%s868 + $0x8] sm:$0xff]
        %v871 = vld [vmem:[%s868 + $0x10] sm:$0xff]
        %v872 = vld [vmem:[%s868 + $0x18] sm:$0xff]
        %s873 = scalar_lea.vmem %s2, 16
        %v874 = vld [vmem:[%s873] sm:$0xff]
        %v875 = vld [vmem:[%s873 + $0x8] sm:$0xff]
        %877 = vset.pattern.permute.xlu0 0
        %878 = vperm.xlu0 %877, %v874
        %v879 = vpop.permute.xlu0 %878
        %882 = vset.pattern.permute.xlu0 0
        %883 = vperm.xlu0 %882, %v875
        %v884 = vpop.permute.xlu0 %883
        %vm886 = vcmask 719872
        %v888 = vsel %vm886, %v870, 0
        %v891 = vsel %vm886, %v872, 0
        %893 = vmatpush.msra.mxu0 %v745
        %894 = vmatpush.msra.mxu0 %v548
        %895 = vmatpush.msra.mxu0 %v546
        %896 = vmatpush.msra.mxu0 %v544
        %897 = vmatpush.msra.mxu0 %v710
        %898 = vmatpush.msra.mxu0 %v708
        %899 = vmatpush.msra.mxu0 %v706
        %900 = vmatpush.msra.mxu0 %v671
        %901 = vmatpush.msra.mxu0 %v669
        %902 = vmatpush.msra.mxu0 %v667
        %903 = vmatpush.msra.mxu0 %v632
        %904 = vmatpush.msra.mxu0 %v630
        %905 = vmatpush.msra.mxu0 %v628
        %906 = vmatpush.msra.mxu0 %v593
        %907 = vmatpush.msra.mxu0 %v591
        %908 = vmatpush.msra.mxu0 %v589
        %909 = vmatmul.f32.gmra.mxu0 %v869
        %v910 = vpop.f32.mrf.mxu0
        %v911 = vadd.f32 %v879, %v910
        %912 = vmatmul.f32.gmra.mxu0 %v871
        %v913 = vpop.f32.mrf.mxu0
        %v914 = vadd.f32 %v884, %v913
        %915 = vdwg.mxu0
        %916 = vmatpush.msra.mxu0 0.0
        %917 = vmatpush.msra.mxu0 0.0
        %918 = vmatpush.msra.mxu0 0.0
        %919 = vmatpush.msra.mxu0 0.0
        %920 = vmatpush.msra.mxu0 0.0
        %921 = vmatpush.msra.mxu0 %v866
        %922 = vmatpush.msra.mxu0 %v864
        %923 = vmatpush.msra.mxu0 %v862
        %924 = vmatpush.msra.mxu0 %v827
        %925 = vmatpush.msra.mxu0 %v825
        %926 = vmatpush.msra.mxu0 %v823
        %927 = vmatpush.msra.mxu0 %v788
        %928 = vmatpush.msra.mxu0 %v786
        %929 = vmatpush.msra.mxu0 %v784
        %930 = vmatpush.msra.mxu0 %v749
        %931 = vmatpush.msra.mxu0 %v747
        %932 = vmatmul.f32.gmra.mxu0 %v888
        %v933 = vpop.f32.mrf.mxu0
        %v934 = vadd.f32 %v911, %v933
        %935 = vmatmul.f32.gmra.mxu0 %v891
        %v936 = vpop.f32.mrf.mxu0
        %v937 = vadd.f32 %v914, %v936
        %938 = vdwg.mxu0
        %939 = vmatpush.msra.mxu0 %v746
        %940 = vmatpush.msra.mxu0 %v549
        %941 = vmatpush.msra.mxu0 %v547
        %942 = vmatpush.msra.mxu0 %v545
        %943 = vmatpush.msra.mxu0 %v711
        %944 = vmatpush.msra.mxu0 %v709
        %945 = vmatpush.msra.mxu0 %v707
        %946 = vmatpush.msra.mxu0 %v672
        %947 = vmatpush.msra.mxu0 %v670
        %948 = vmatpush.msra.mxu0 %v668
        %949 = vmatpush.msra.mxu0 %v633
        %950 = vmatpush.msra.mxu0 %v631
        %951 = vmatpush.msra.mxu0 %v629
        %952 = vmatpush.msra.mxu0 %v594
        %953 = vmatpush.msra.mxu0 %v592
        %954 = vmatpush.msra.mxu0 %v590
        %955 = vmatmul.f32.gmra.mxu0 %v869
        %v956 = vpop.f32.mrf.mxu0
        %v957 = vadd.f32 %v879, %v956
        %958 = vmatmul.f32.gmra.mxu0 %v871
        %v959 = vpop.f32.mrf.mxu0
        %v960 = vadd.f32 %v884, %v959
        %961 = vdwg.mxu0
        %962 = vmatpush.msra.mxu0 0.0
        %963 = vmatpush.msra.mxu0 0.0
        %964 = vmatpush.msra.mxu0 0.0
        %965 = vmatpush.msra.mxu0 0.0
        %966 = vmatpush.msra.mxu0 0.0
        %967 = vmatpush.msra.mxu0 %v867
        %968 = vmatpush.msra.mxu0 %v865
        %969 = vmatpush.msra.mxu0 %v863
        %970 = vmatpush.msra.mxu0 %v828
        %971 = vmatpush.msra.mxu0 %v826
        %972 = vmatpush.msra.mxu0 %v824
        %973 = vmatpush.msra.mxu0 %v789
        %974 = vmatpush.msra.mxu0 %v787
        %975 = vmatpush.msra.mxu0 %v785
        %976 = vmatpush.msra.mxu0 %v750
        %977 = vmatpush.msra.mxu0 %v748
        %978 = vmatmul.f32.gmra.mxu0 %v888
        %v979 = vpop.f32.mrf.mxu0
        %v980 = vadd.f32 %v957, %v979
        %981 = vmatmul.f32.gmra.mxu0 %v891
        %v982 = vpop.f32.mrf.mxu0
        %v983 = vadd.f32 %v960, %v982
        %984 = vdwg.mxu0
        %v985 = vadd.f32 %v934, %v980
        %986 = vadd.xlane.f32.xlu0 %v985
        %v987 = vpop.xlane.xlu0 %986
        %v988 = vadd.f32 %v937, %v983
        %989 = vadd.xlane.f32.xlu0 %v988
        %v990 = vpop.xlane.xlu0 %989
        %v991 = vmul.f32 %v987, %v459
        %v992 = vmul.f32 %v990, %v459
        %v993 = vsub.f32 %v934, %v991
        %v994 = vsub.f32 %v980, %v991
        %v995 = vsub.f32 %v937, %v992
        %v996 = vsub.f32 %v983, %v992
        %v997 = vmul.f32 %v993, %v993
        %v998 = vmul.f32 %v994, %v994
        %v999 = vmul.f32 %v995, %v995
        %v1000 = vmul.f32 %v996, %v996
        %v1001 = vadd.f32 %v997, %v998
        %1002 = vadd.xlane.f32.xlu0 %v1001
        %v1003 = vpop.xlane.xlu0 %1002
        %v1004 = vadd.f32 %v999, %v1000
        %1005 = vadd.xlane.f32.xlu0 %v1004
        %v1006 = vpop.xlane.xlu0 %1005
        %v1007 = vmul.f32 %v1003, %v459
        %v1008 = vmul.f32 %v1006, %v459
        %v1009 = vadd.f32 %v1007, 1e-05
        %v1010 = vadd.f32 %v1008, 1e-05
        %v1011 = vrsqrt.pop %v1009
        %v1012 = vmul.f32 %v1011, %v1009
        %v1013 = vmul.f32 %v1012, %v1011
        %v1014 = vmul.f32 0.5, %v1013
        %v1015 = vsub.f32 1.5, %v1014
        %v1016 = vmul.f32 %v1011, %v1015
        %vm1017 = vweird.f32 %v1009
        %vm1018 = vweird.f32 %v1011
        %vm1019 = vmor %vm1017, %vm1018
        %v1020 = vsel %vm1019, %v1011, %v1016
        %v1021 = vrsqrt.pop %v1010
        %v1022 = vmul.f32 %v1021, %v1010
        %v1023 = vmul.f32 %v1022, %v1021
        %v1024 = vmul.f32 0.5, %v1023
        %v1025 = vsub.f32 1.5, %v1024
        %v1026 = vmul.f32 %v1021, %v1025
        %vm1027 = vweird.f32 %v1010
        %vm1028 = vweird.f32 %v1021
        %vm1029 = vmor %vm1027, %vm1028
        %v1030 = vsel %vm1029, %v1021, %v1026
        %v1031 = vmul.f32 %v993, %v1020
        %v1032 = vmul.f32 %v994, %v1020
        %v1033 = vmul.f32 %v995, %v1030
        %v1034 = vmul.f32 %v996, %v1030
        %1035 = vset.pattern.permute.xlu0 1
        %1036 = vperm.xlu0 %1035, %v874
        %v1037 = vpop.permute.xlu0 %1036
        %1039 = vset.pattern.permute.xlu0 1
        %1040 = vperm.xlu0 %1039, %v875
        %v1041 = vpop.permute.xlu0 %1040
        %v1043 = vmul.f32 %v1031, %v1037
        %v1044 = vmul.f32 %v1032, %v1037
        %v1045 = vmul.f32 %v1033, %v1041
        %v1046 = vmul.f32 %v1034, %v1041
        %1047 = vset.pattern.permute.xlu0 2
        %1048 = vperm.xlu0 %1047, %v874
        %v1049 = vpop.permute.xlu0 %1048
        %1051 = vset.pattern.permute.xlu0 2
        %1052 = vperm.xlu0 %1051, %v875
        %v1053 = vpop.permute.xlu0 %1052
        %v1055 = vadd.f32 %v1043, %v1049
        %v1056 = vadd.f32 %v1044, %v1049
        %v1057 = vadd.f32 %v1045, %v1053
        %v1058 = vadd.f32 %v1046, %v1053
        %vm1059 = vcmp.gt.f32.partialorder %v1055, 0.0
        %vm1060 = vcmp.gt.f32.partialorder %v1056, 0.0
        %vm1061 = vcmp.gt.f32.partialorder %v1057, 0.0
        %vm1062 = vcmp.gt.f32.partialorder %v1058, 0.0
        %v1063 = vmul.f32 %v1055, 0.01
        %v1064 = vmul.f32 %v1056, 0.01
        %v1065 = vmul.f32 %v1057, 0.01
        %v1066 = vmul.f32 %v1058, 0.01
        %v1067 = vsel %vm1059, %v1055, %v1063
        %v1068 = vsel %vm1060, %v1056, %v1064
        %v1069 = vsel %vm1061, %v1057, %v1065
        %v1070 = vsel %vm1062, %v1058, %v1066
        %1071 = vst [vmem:[#allocation2 + $0x30] sm:$0xff] %v1067
        %1072 = vst [vmem:[#allocation2 + $0x38] sm:$0xff] %v1068
        %1073 = vst [vmem:[#allocation2 + $0x40] sm:$0xff] %v1069
        %1074 = vst [vmem:[#allocation2 + $0x48] sm:$0xff] %v1070
        %s1075 = scalar_lea.vmem [#allocation3], 64
        %v1076 = vld [vmem:[%s1075] sm:$0xff]
        %v1077 = vld [vmem:[%s1075 + $0x10] sm:$0xff]
        %v1078 = vld [vmem:[#allocation2] sm:$0xff]
        %v1079 = vld [vmem:[#allocation2 + $0x8] sm:$0xff]
        %v1080 = vld [vmem:[#allocation2 + $0x10] sm:$0xff]
        %v1081 = vld [vmem:[#allocation2 + $0x18] sm:$0xff]
        %v1082 = vld [vmem:[#allocation2 + $0x20] sm:$0xff]
        %v1083 = vld [vmem:[#allocation2 + $0x28] sm:$0xff]
        %v1084 = vld [vmem:[#allocation2 + $0x30] sm:$0xff]
        %v1085 = vld [vmem:[#allocation2 + $0x38] sm:$0xff]
        %v1086 = vld [vmem:[#allocation2 + $0x40] sm:$0xff]
        %v1087 = vld [vmem:[#allocation2 + $0x48] sm:$0xff]
        %s1088 = scalar_lea.vmem %s2, 32
        %v1089 = vld [vmem:[%s1088] sm:$0xff]
        %v1090 = vld [vmem:[%s1088 + $0x8] sm:$0xff]
        %1092 = vset.pattern.permute.xlu0 0
        %1093 = vperm.xlu0 %1092, %v1089
        %v1094 = vpop.permute.xlu0 %1093
        %1097 = vset.pattern.permute.xlu0 0
        %1098 = vperm.xlu0 %1097, %v1090
        %v1099 = vpop.permute.xlu0 %1098
        %vm1100 = vcmask 326656
        %v1102 = vsel %vm1100, %v1076, 0
        %v1105 = vsel %vm1100, %v1077, 0
        %1107 = vmatpush.msra.mxu0 0.0
        %1108 = vmatpush.msra.mxu0 0.0
        %1109 = vmatpush.msra.mxu0 0.0
        %1110 = vmatpush.msra.mxu0 0.0
        %1111 = vmatpush.msra.mxu0 0.0
        %1112 = vmatpush.msra.mxu0 0.0
        %1113 = vmatpush.msra.mxu0 0.0
        %1114 = vmatpush.msra.mxu0 0.0
        %1115 = vmatpush.msra.mxu0 0.0
        %1116 = vmatpush.msra.mxu0 0.0
        %1117 = vmatpush.msra.mxu0 0.0
        %1118 = vmatpush.msra.mxu0 %v1086
        %1119 = vmatpush.msra.mxu0 %v1084
        %1120 = vmatpush.msra.mxu0 %v1082
        %1121 = vmatpush.msra.mxu0 %v1080
        %1122 = vmatpush.msra.mxu0 %v1078
        %1123 = vmatmul.f32.gmra.mxu0 %v1102
        %v1124 = vpop.f32.mrf.mxu0
        %v1125 = vadd.f32 %v1094, %v1124
        %1126 = vmatmul.f32.gmra.mxu0 %v1105
        %v1127 = vpop.f32.mrf.mxu0
        %1128 = vdwg.mxu0
        %1129 = vmatpush.msra.mxu0 0.0
        %1130 = vmatpush.msra.mxu0 0.0
        %1131 = vmatpush.msra.mxu0 0.0
        %1132 = vmatpush.msra.mxu0 0.0
        %1133 = vmatpush.msra.mxu0 0.0
        %1134 = vmatpush.msra.mxu0 0.0
        %1135 = vmatpush.msra.mxu0 0.0
        %1136 = vmatpush.msra.mxu0 0.0
        %1137 = vmatpush.msra.mxu0 0.0
        %1138 = vmatpush.msra.mxu0 0.0
        %1139 = vmatpush.msra.mxu0 0.0
        %1140 = vmatpush.msra.mxu0 %v1087
        %1141 = vmatpush.msra.mxu0 %v1085
        %1142 = vmatpush.msra.mxu0 %v1083
        %1143 = vmatpush.msra.mxu0 %v1081
        %1144 = vmatpush.msra.mxu0 %v1079
        %1145 = vmatmul.f32.gmra.mxu0 %v1102
        %v1146 = vpop.f32.mrf.mxu0
        %v1147 = vadd.f32 %v1094, %v1146
        %1148 = vmatmul.f32.gmra.mxu0 %v1105
        %v1149 = vpop.f32.mrf.mxu0
        %1150 = vdwg.mxu0
        %v1151 = vadd.f32 %v1125, %v1147
        %1152 = vadd.xlane.f32.xlu0 %v1151
        %v1153 = vpop.xlane.xlu0 %1152
        %v1154 = vmul.f32 %v1153, %v459
        %v1155 = vsub.f32 %v1125, %v1154
        %v1156 = vsub.f32 %v1147, %v1154
        %v1157 = vmul.f32 %v1155, %v1155
        %v1158 = vmul.f32 %v1156, %v1156
        %v1159 = vadd.f32 %v1157, %v1158
        %1160 = vadd.xlane.f32.xlu0 %v1159
        %v1161 = vpop.xlane.xlu0 %1160
        %v1162 = vmul.f32 %v1161, %v459
        %v1163 = vadd.f32 %v1162, 1e-05
        %v1164 = vrsqrt.pop %v1163
        %v1165 = vmul.f32 %v1164, %v1163
        %v1166 = vmul.f32 %v1165, %v1164
        %v1167 = vmul.f32 0.5, %v1166
        %v1168 = vsub.f32 1.5, %v1167
        %v1169 = vmul.f32 %v1164, %v1168
        %vm1170 = vweird.f32 %v1163
        %vm1171 = vweird.f32 %v1164
        %vm1172 = vmor %vm1170, %vm1171
        %v1173 = vsel %vm1172, %v1164, %v1169
        %v1174 = vmul.f32 %v1155, %v1173
        %v1175 = vmul.f32 %v1156, %v1173
        %1176 = vset.pattern.permute.xlu0 1
        %1177 = vperm.xlu0 %1176, %v1089
        %v1178 = vpop.permute.xlu0 %1177
        %v1180 = vmul.f32 %v1174, %v1178
        %v1181 = vmul.f32 %v1175, %v1178
        %1182 = vset.pattern.permute.xlu0 2
        %1183 = vperm.xlu0 %1182, %v1089
        %v1184 = vpop.permute.xlu0 %1183
        %v1186 = vadd.f32 %v1180, %v1184
        %v1187 = vadd.f32 %v1181, %v1184
        %vm1188 = vcmp.gt.f32.partialorder %v1186, 0.0
        %vm1189 = vcmp.gt.f32.partialorder %v1187, 0.0
        %v1190 = vmul.f32 %v1186, 0.01
        %v1191 = vmul.f32 %v1187, 0.01
        %v1192 = vsel %vm1188, %v1186, %v1190
        %v1193 = vsel %vm1189, %v1187, %v1191
        %1195 = vrot.lane.b32.xlu0 %v1193, 17
        %v1196 = vpop.permute.xlu0 %1195
        %1199 = vrot.lane.b32.xlu0 %v1192, 17
        %v1200 = vpop.permute.xlu0 %1199
        %v1201 = vsel %vm234, %v1200, %v1196
        %v1204 = vsel %vm234, %v1196, %v1200
        %v1205 = vld [vmem:[%s3] ss:$8 sm:$0x3]
        %v1207 = vperm.slane %v1205, 0
        %v1208 = vperm.slane %v1205, 1
        %v1211 = vmul.f32 %v1204, %v1207
        %v1212 = vmul.f32 %v1201, %v1208
        %1213 = vrot.lane.b32.xlu0 %v1193, 16
        %v1214 = vpop.permute.xlu0 %1213
        %1216 = vrot.lane.b32.xlu0 %v1192, 16
        %v1217 = vpop.permute.xlu0 %1216
        %v1218 = vsel %vm252, %v1217, %v1214
        %v1221 = vsel %vm252, %v1214, %v1217
        %v1222 = vld [vmem:[%s257] ss:$8 sm:$0x3]
        %v1224 = vperm.slane %v1222, 0
        %v1225 = vperm.slane %v1222, 1
        %v1228 = vmul.f32 %v1221, %v1224
        %v1229 = vmul.f32 %v1218, %v1225
        %1230 = vrot.lane.b32.xlu0 %v1193, 15
        %v1231 = vpop.permute.xlu0 %1230
        %1233 = vrot.lane.b32.xlu0 %v1192, 15
        %v1234 = vpop.permute.xlu0 %1233
        %v1235 = vsel %vm271, %v1234, %v1231
        %v1238 = vsel %vm271, %v1231, %v1234
        %v1239 = vld [vmem:[%s276] ss:$8 sm:$0x3]
        %v1241 = vperm.slane %v1239, 0
        %v1242 = vperm.slane %v1239, 1
        %v1245 = vmul.f32 %v1238, %v1241
        %v1246 = vmul.f32 %v1235, %v1242
        %1247 = vrot.lane.b32.xlu0 %v1193, 1
        %v1248 = vpop.permute.xlu0 %1247
        %1250 = vrot.lane.b32.xlu0 %v1192, 1
        %v1251 = vpop.permute.xlu0 %1250
        %v1252 = vsel %vm290, %v1251, %v1248
        %v1255 = vsel %vm290, %v1248, %v1251
        %v1256 = vld [vmem:[%s295] ss:$8 sm:$0x3]
        %v1258 = vperm.slane %v1256, 0
        %v1259 = vperm.slane %v1256, 1
        %v1262 = vmul.f32 %v1255, %v1258
        %v1263 = vmul.f32 %v1252, %v1259
        %1264 = vrot.lane.b32.xlu0 %v1192, 127
        %v1265 = vpop.permute.xlu0 %1264
        %1266 = vrot.lane.b32.xlu0 %v1193, 127
        %v1267 = vpop.permute.xlu0 %1266
        %v1268 = vsel %vm308, %v1265, %v1267
        %v1272 = vsel %vm308, %v1267, %v1265
        %v1273 = vld [vmem:[%s314] ss:$8 sm:$0x3]
        %v1275 = vperm.slane %v1273, 0
        %v1276 = vperm.slane %v1273, 1
        %v1279 = vmul.f32 %v1268, %v1275
        %v1280 = vmul.f32 %v1272, %v1276
        %1281 = vrot.lane.b32.xlu0 %v1192, 113
        %v1282 = vpop.permute.xlu0 %1281
        %1283 = vrot.lane.b32.xlu0 %v1193, 113
        %v1284 = vpop.permute.xlu0 %1283
        %v1285 = vsel %vm327, %v1282, %v1284
        %v1289 = vsel %vm327, %v1284, %v1282
        %v1290 = vld [vmem:[%s333] ss:$8 sm:$0x3]
        %v1292 = vperm.slane %v1290, 0
        %v1293 = vperm.slane %v1290, 1
        %v1296 = vmul.f32 %v1285, %v1292
        %v1297 = vmul.f32 %v1289, %v1293
        %1298 = vrot.lane.b32.xlu0 %v1192, 112
        %v1299 = vpop.permute.xlu0 %1298
        %1300 = vrot.lane.b32.xlu0 %v1193, 112
        %v1301 = vpop.permute.xlu0 %1300
        %v1302 = vsel %vm346, %v1299, %v1301
        %v1306 = vsel %vm346, %v1301, %v1299
        %v1307 = vld [vmem:[%s352] ss:$8 sm:$0x3]
        %v1309 = vperm.slane %v1307, 0
        %v1310 = vperm.slane %v1307, 1
        %v1313 = vmul.f32 %v1302, %v1309
        %v1314 = vmul.f32 %v1306, %v1310
        %1315 = vrot.lane.b32.xlu0 %v1192, 111
        %v1316 = vpop.permute.xlu0 %1315
        %1317 = vrot.lane.b32.xlu0 %v1193, 111
        %v1318 = vpop.permute.xlu0 %1317
        %v1319 = vsel %vm365, %v1316, %v1318
        %v1323 = vsel %vm365, %v1318, %v1316
        %v1324 = vld [vmem:[%s371] ss:$8 sm:$0x3]
        %v1326 = vperm.slane %v1324, 0
        %v1327 = vperm.slane %v1324, 1
        %v1330 = vmul.f32 %v1319, %v1326
        %v1331 = vmul.f32 %v1323, %v1327
        %s1332 = scalar_lea.vmem [#allocation3], 96
        %v1333 = vld [vmem:[%s1332] sm:$0xff]
        %v1334 = vld [vmem:[%s1332 + $0x10] sm:$0xff]
        %s1335 = scalar_lea.vmem %s2, 48
        %v1336 = vld [vmem:[%s1335] sm:$0xff]
        %v1337 = vld [vmem:[%s1335 + $0x8] sm:$0xff]
        %1339 = vset.pattern.permute.xlu0 0
        %1340 = vperm.xlu0 %1339, %v1336
        %v1341 = vpop.permute.xlu0 %1340
        %1344 = vset.pattern.permute.xlu0 0
        %1345 = vperm.xlu0 %1344, %v1337
        %v1346 = vpop.permute.xlu0 %1345
        %v1348 = vsel %vm394, %v1333, 0
        %v1351 = vsel %vm394, %v1334, 0
        %1353 = vmatpush.msra.mxu0 0.0
        %1354 = vmatpush.msra.mxu0 0.0
        %1355 = vmatpush.msra.mxu0 0.0
        %1356 = vmatpush.msra.mxu0 0.0
        %1357 = vmatpush.msra.mxu0 0.0
        %1358 = vmatpush.msra.mxu0 0.0
        %1359 = vmatpush.msra.mxu0 0.0
        %1360 = vmatpush.msra.mxu0 %v1330
        %1361 = vmatpush.msra.mxu0 %v1313
        %1362 = vmatpush.msra.mxu0 %v1296
        %1363 = vmatpush.msra.mxu0 %v1279
        %1364 = vmatpush.msra.mxu0 %v1192
        %1365 = vmatpush.msra.mxu0 %v1262
        %1366 = vmatpush.msra.mxu0 %v1245
        %1367 = vmatpush.msra.mxu0 %v1228
        %1368 = vmatpush.msra.mxu0 %v1211
        %1369 = vmatmul.f32.gmra.mxu0 %v1348
        %v1370 = vpop.f32.mrf.mxu0
        %v1371 = vadd.f32 %v1341, %v1370
        %1372 = vmatmul.f32.gmra.mxu0 %v1351
        %v1373 = vpop.f32.mrf.mxu0
        %1374 = vdwg.mxu0
        %1375 = vmatpush.msra.mxu0 0.0
        %1376 = vmatpush.msra.mxu0 0.0
        %1377 = vmatpush.msra.mxu0 0.0
        %1378 = vmatpush.msra.mxu0 0.0
        %1379 = vmatpush.msra.mxu0 0.0
        %1380 = vmatpush.msra.mxu0 0.0
        %1381 = vmatpush.msra.mxu0 0.0
        %1382 = vmatpush.msra.mxu0 %v1331
        %1383 = vmatpush.msra.mxu0 %v1314
        %1384 = vmatpush.msra.mxu0 %v1297
        %1385 = vmatpush.msra.mxu0 %v1280
        %1386 = vmatpush.msra.mxu0 %v1193
        %1387 = vmatpush.msra.mxu0 %v1263
        %1388 = vmatpush.msra.mxu0 %v1246
        %1389 = vmatpush.msra.mxu0 %v1229
        %1390 = vmatpush.msra.mxu0 %v1212
        %1391 = vmatmul.f32.gmra.mxu0 %v1348
        %v1392 = vpop.f32.mrf.mxu0
        %v1393 = vadd.f32 %v1341, %v1392
        %1394 = vmatmul.f32.gmra.mxu0 %v1351
        %v1395 = vpop.f32.mrf.mxu0
        %1396 = vdwg.mxu0
        %v1397 = vadd.f32 %v1371, %v1393
        %1398 = vadd.xlane.f32.xlu0 %v1397
        %v1399 = vpop.xlane.xlu0 %1398
        %v1400 = vmul.f32 %v1399, %v459
        %v1401 = vsub.f32 %v1371, %v1400
        %v1402 = vsub.f32 %v1393, %v1400
        %v1403 = vmul.f32 %v1401, %v1401
        %v1404 = vmul.f32 %v1402, %v1402
        %v1405 = vadd.f32 %v1403, %v1404
        %1406 = vadd.xlane.f32.xlu0 %v1405
        %v1407 = vpop.xlane.xlu0 %1406
        %v1408 = vmul.f32 %v1407, %v459
        %v1409 = vadd.f32 %v1408, 1e-05
        %v1410 = vrsqrt.pop %v1409
        %v1411 = vmul.f32 %v1410, %v1409
        %v1412 = vmul.f32 %v1411, %v1410
        %v1413 = vmul.f32 0.5, %v1412
        %v1414 = vsub.f32 1.5, %v1413
        %v1415 = vmul.f32 %v1410, %v1414
        %vm1416 = vweird.f32 %v1409
        %vm1417 = vweird.f32 %v1410
        %vm1418 = vmor %vm1416, %vm1417
        %v1419 = vsel %vm1418, %v1410, %v1415
        %v1420 = vmul.f32 %v1401, %v1419
        %v1421 = vmul.f32 %v1402, %v1419
        %1422 = vset.pattern.permute.xlu0 1
        %1423 = vperm.xlu0 %1422, %v1336
        %v1424 = vpop.permute.xlu0 %1423
        %v1426 = vmul.f32 %v1420, %v1424
        %v1427 = vmul.f32 %v1421, %v1424
        %1428 = vset.pattern.permute.xlu0 2
        %1429 = vperm.xlu0 %1428, %v1336
        %v1430 = vpop.permute.xlu0 %1429
        %v1432 = vadd.f32 %v1426, %v1430
        %v1433 = vadd.f32 %v1427, %v1430
        %vm1434 = vcmp.gt.f32.partialorder %v1432, 0.0
        %vm1435 = vcmp.gt.f32.partialorder %v1433, 0.0
        %v1436 = vmul.f32 %v1432, 0.01
        %v1437 = vmul.f32 %v1433, 0.01
        %v1438 = vsel %vm1434, %v1432, %v1436
        %v1439 = vsel %vm1435, %v1433, %v1437
        %1440 = vst [vmem:[%s207] sm:$0xff] %v1438
        %1441 = vst [vmem:[%s207 + $0x8] sm:$0xff] %v1439
        %s1442 = sand.u32 %s116, 1
        %s1443 = scalar_lea.sflag [#allocation5], %s1442
        %s1444 = sand.u32 %s116, 1
        %s1445 = smul.addr %s1444, 16
        %s1446 = scalar_lea.vmem [#allocation6], %s1445
        // Predicated region
        $region41: #{tpu_custom_call.1} parent=35 // pred_check
          %p1447 = pneg %p126
        $region42: #{tpu_custom_call.1} parent=35 // pred_check_branch
          %1449 = sbr.rel (%p1447) target = $region44
        $region43: #{tpu_custom_call.1} parent=35 // pred_region
          %1451 = vsyncadd %s1443, 0
          %s1452 = smul.addr %s19, 2
          %s1453 = smul.addr %s1452, 8
          %s1454 = scalar_lea.hbm %s4, %s1453
          %s1456 = sshll.u32 %s1446, 4
          %s1457 = int_to_ptr.vmem [resolvable:$true] %s1456
          %s1458 = sshll.u32 %s1454, 4
          %s1459 = int_to_ptr.hbm [resolvable:$true] %s1458
          %1461 = dma.vmem_to_hbm [thread:$0]  %s1457, 256, %s1459, %s1443
        $region44: #{tpu_custom_call.1} parent=35 // pred_fallthru
          _
      $region36: #{tpu_custom_call.1} parent=5 // pred_fallthru
        _
      %p1462 = scmp.le.s32.totalorder 2, %s14
      // Predicated region
      $region45: #{tpu_custom_call.1} parent=5 // pred_check
        %p1463 = pneg %p1462
      $region46: #{tpu_custom_call.1} parent=5 // pred_check_branch
        %1465 = sbr.rel (%p1463) target = $region48
      $region47: #{tpu_custom_call.1} parent=5 // pred_region
        %s1466 = ssub.s32 %s14, 2
        // Predicated region
        $region49: #{tpu_custom_call.1} parent=47 // pred_check
          %p1467 = pneg %p132
        $region50: #{tpu_custom_call.1} parent=47 // pred_check_branch
          %1469 = sbr.rel (%p1467) target = $region52
        $region51: #{tpu_custom_call.1} parent=47 // pred_region
          %s1470 = sand.u32 %s117, 1
          %s1471 = scalar_lea.sflag [#allocation5], %s1470
          %s1472 = sand.u32 %s117, 1
          %s1473 = smul.addr %s1472, 16
          %s1474 = scalar_lea.vmem [#allocation6], %s1473
          %1476 = dma.done %s1471, 256
        $region52: #{tpu_custom_call.1} parent=47 // pred_fallthru
          _
      $region48: #{tpu_custom_call.1} parent=5 // pred_fallthru
        _
    $region6: #{tpu_custom_call.1} parent=1 // loop_footer
      %s18 = sadd.s32 1, %s14
    $region7: #{tpu_custom_call.1} parent=1 // loop_footer_branch
      %13 = sbr.rel target = $region3
    $region8: #{tpu_custom_call.1} parent=1 // loop_exit
      _
    %1477 = vsyncpa [#allocation4], 1
    %s1478 = scalar_lea.sflag [#allocation4], 1
    %1479 = vsyncpa %s1478, 1
    %1480 = vsyncpa [#allocation5], 1
    %s1481 = scalar_lea.sflag [#allocation5], 1
    %1482 = vsyncpa %s1481, 1

</llo_original>
